<compile_context>
chip_gen: v6e
topology: v6e:2x2x1
jax: 0.10.0
libtpu: 0.0.40
codegen_flags: <defaults>
</compile_context>

<pallas_src>
import functools

import jax
import jax.numpy as jnp
from jax.experimental import pallas as pl
from jax.experimental.pallas import tpu as pltpu


def _round_up(x: int, m: int) -> int:
    return ((x + m - 1) // m) * m


def _lstm_fused_kernel(x_ref, wih_ref, whh_ref, bias_ref, h_out_ref,
                       gx_scr, h_scr, c_scr,
                       *, t_chunk: int, batch_chunk: int,
                       hidden_padded: int, seq_len: int):
    """One grid step = `t_chunk` LSTM time steps for one batch chunk.

    x_ref    : (1, 1, t_chunk*Bc, Dp)  param_dtype  raw input rows (time-major in chunk)
    wih_ref  : (Dp, 4*Hp)              param_dtype  W_ih^T, resident (constant index_map)
    whh_ref  : (Hp, 4*Hp)              param_dtype  W_hh^T, resident (constant index_map)
    bias_ref : (1, 4*Hp)               f32          b_ih + b_hh
    h_out_ref: (Bc, Hp)                f32          final hidden state for this chunk
    gx_scr   : (t_chunk*Bc, 4*Hp)      f32          fused input projection for the chunk
    h_scr    : (Bc, Hp)                param_dtype  recurrent h across time chunks
    c_scr    : (Bc, Hp)                f32          recurrent c across time chunks
    """
    t_blk = pl.program_id(1)
    Hp = hidden_padded
    Bc = batch_chunk

    @pl.when(t_blk == 0)
    def _init():
        h_scr[...] = jnp.zeros_like(h_scr)
        c_scr[...] = jnp.zeros_like(c_scr)

    # Fused input projection, hoisted out of the serial recurrence: one MXU matmul
    # with a large M (= t_chunk * Bc), f32 accumulation.
    gx_scr[...] = jnp.dot(x_ref[0, 0], wih_ref[...],
                          preferred_element_type=jnp.float32) + bias_ref[...]

    t0 = t_blk * t_chunk
    h = h_scr[...]          # param_dtype (bf16 by default)
    c = c_scr[...]          # f32

    # Serial recurrence: only h_{t-1} @ W_hh^T remains in the loop.  Statically
    # unrolled so MXU issue, EUP (sigmoid/tanh) pushes and VPU c/h updates co-issue.
    for i in range(t_chunk):
        gates = gx_scr[i * Bc:(i + 1) * Bc, :] + jnp.dot(
            h, whh_ref[...], preferred_element_type=jnp.float32)
        i_g = jax.nn.sigmoid(gates[:, 0 * Hp:1 * Hp])
        f_g = jax.nn.sigmoid(gates[:, 1 * Hp:2 * Hp])
        g_g = jnp.tanh(gates[:, 2 * Hp:3 * Hp])
        o_g = jax.nn.sigmoid(gates[:, 3 * Hp:4 * Hp])
        c_new = f_g * c + i_g * g_g
        h_new = o_g * jnp.tanh(c_new)

        # Exactly-once capture of the final hidden state at global step T-1 (stored
        # from the f32 value, before the carry cast).  Back-padded steps after T-1
        # may run but nothing ever reads their state.
        @pl.when(t0 + i == seq_len - 1)
        def _store():
            h_out_ref[...] = h_new.astype(h_out_ref.dtype)

        h = h_new.astype(h_scr.dtype)   # carry the matmul operand in param dtype
        c = c_new

    h_scr[...] = h
    c_scr[...] = c


def lstm_forward(x_nct, w_ih, w_hh, b_ih, b_hh, *,
                 t_chunk: int = 8, batch_chunk=None,
                 param_dtype=jnp.bfloat16):
    """Pallas LSTM forward matching the PyTorch module.

    x_nct : (B, input_size, T)  -- same layout as the PyTorch module's input
    w_ih  : (4H, input_size)    -- PyTorch weight_ih_l0, gate order [i, f, g, o]
    w_hh  : (4H, H)             -- PyTorch weight_hh_l0
    b_ih, b_hh : (4H,)
    returns h_T : (B, H)  float32

    param_dtype controls the weight/x/h-carry precision (bf16 default; pass
    jnp.float32 for accuracy-sensitive long sequences).
    """
    B, D, T = x_nct.shape
    H = w_hh.shape[1]
    f32 = jnp.float32

    Hp = _round_up(H, 128)      # lane-aligned gate width
    Dp = _round_up(D, 128)      # lane-aligned contraction dim

    # batch_chunk == MXU "M" of the serial recurrent matmul.  Fill it (up to 256)
    # instead of 8; multiple of 16 keeps bf16 sublane packing trivial.  B <= 256
    # gives a single chunk (ideal on 1-TC v5e/v6e); larger B yields >= 2 chunks for
    # the "parallel" axis to shard across v7x's two TensorCores.
    if batch_chunk is None:
        batch_chunk = min(_round_up(B, 16), 256)
    assert batch_chunk % 8 == 0, "batch_chunk must be a multiple of 8"
    Bp = _round_up(B, batch_chunk)
    nb = Bp // batch_chunk
    Tp = _round_up(max(T, 1), t_chunk)
    nt = Tp // t_chunk
    tb = t_chunk * batch_chunk

    # --- Weights: PyTorch gate order [i, f, g, o]; pad H->Hp per gate block and
    # D->Dp with zeros (mathematically inert, see kernel header). ---
    wih_t = jnp.transpose(w_ih).astype(f32).reshape(D, 4, H)
    wih_t = jnp.pad(wih_t, ((0, Dp - D), (0, 0), (0, Hp - H)))
    wih_t = wih_t.reshape(Dp, 4 * Hp).astype(param_dtype)

    whh_t = jnp.transpose(w_hh).astype(f32).reshape(H, 4, H)
    whh_t = jnp.pad(whh_t, ((0, Hp - H), (0, 0), (0, Hp - H)))
    whh_t = whh_t.reshape(Hp, 4 * Hp).astype(param_dtype)

    bias = (b_ih + b_hh).astype(f32).reshape(4, H)
    bias = jnp.pad(bias, ((0, 0), (0, Hp - H))).reshape(1, 4 * Hp)

    # --- Input: (B, D, T) -> (nt, nb, t_chunk*batch_chunk, Dp), time back-padded.
    # Streaming raw x (param_dtype) instead of precomputed f32 gates slashes the
    # dominant HBM read stream.
    x_tbd = jnp.transpose(x_nct, (2, 0, 1)).astype(f32)            # (T, B, D)
    x_tbd = jnp.pad(x_tbd, ((0, Tp - T), (0, Bp - B), (0, Dp - D)))
    x_blk = x_tbd.reshape(nt, t_chunk, nb, batch_chunk, Dp)
    x_blk = jnp.transpose(x_blk, (0, 2, 1, 3, 4))
    x_blk = x_blk.reshape(nt, nb, tb, Dp).astype(param_dtype)

    kernel = functools.partial(_lstm_fused_kernel, t_chunk=t_chunk,
                               batch_chunk=batch_chunk, hidden_padded=Hp,
                               seq_len=T)

    grid_spec = pltpu.PrefetchScalarGridSpec(
        num_scalar_prefetch=0,
        grid=(nb, nt),
        in_specs=[
            # Raw input chunk, auto-pipelined (double-buffered).
            pl.BlockSpec((1, 1, tb, Dp), lambda b, t: (t, b, 0, 0)),
            # Loop-invariant weights / bias: constant block index -> DMA'd once in
            # the prologue, never re-fetched (no per-batch-chunk weight-load stall).
            pl.BlockSpec((Dp, 4 * Hp), lambda b, t: (0, 0)),
            pl.BlockSpec((Hp, 4 * Hp), lambda b, t: (0, 0)),
            pl.BlockSpec((1, 4 * Hp), lambda b, t: (0, 0)),
        ],
        out_specs=pl.BlockSpec((batch_chunk, Hp), lambda b, t: (b, 0)),
        scratch_shapes=[
            pltpu.VMEM((tb, 4 * Hp), jnp.float32),        # fused gx for the chunk
            pltpu.VMEM((batch_chunk, Hp), param_dtype),   # h carry
            pltpu.VMEM((batch_chunk, Hp), jnp.float32),   # c carry
        ],
    )

    # VMEM budget (double-buffered inputs/outputs + scratch) so larger batch/time
    # chunks don't trip the default scoped limit (16 MiB v5e / 32 MiB v6e, v7x).
    isz = 2 if param_dtype == jnp.bfloat16 else 4
    est = (2 * tb * Dp * isz                 # x block
           + 2 * Dp * 4 * Hp * isz           # W_ih^T
           + 2 * Hp * 4 * Hp * isz           # W_hh^T
           + 2 * 4 * Hp * 4                  # bias
           + 2 * batch_chunk * Hp * 4        # out block
           + tb * 4 * Hp * 4                 # gx scratch
           + batch_chunk * Hp * (isz + 4))   # h, c scratch
    # TODO(synk): on v7x (64 MiB physical VMEM) with Hp >= 2048 or very large chunks,
    # tile the 4*Hp gate axis of W_hh instead of raising this limit further.
    vmem_limit = int(min(max(est * 5 // 4 + (2 << 20), 32 << 20), 100 << 20))

    h_pad = pl.pallas_call(
        kernel,
        out_shape=jax.ShapeDtypeStruct((Bp, Hp), jnp.float32),
        grid_spec=grid_spec,
        compiler_params=pltpu.CompilerParams(
            # batch chunks are independent (megacore-shardable on v7x);
            # the time axis is a strict recurrence.
            dimension_semantics=("parallel", "arbitrary"),
            vmem_limit_bytes=vmem_limit,
        ),
    )(x_blk, wih_t, whh_t, bias)

    return h_pad[:B, :H]


def _lstm_reference(x_nct, w_ih, w_hh, b_ih, b_hh):
    """Pure-JAX reference (same math as torch.nn.LSTM forward, h0=c0=0)."""
    B, D, T = x_nct.shape
    H = w_hh.shape[1]
    x_tbd = jnp.transpose(x_nct, (2, 0, 1))

    def step(carry, x_t):
        h, c = carry
        gates = x_t @ w_ih.T + h @ w_hh.T + b_ih + b_hh
        i = jax.nn.sigmoid(gates[:, 0 * H:1 * H])
        f = jax.nn.sigmoid(gates[:, 1 * H:2 * H])
        g = jnp.tanh(gates[:, 2 * H:3 * H])
        o = jax.nn.sigmoid(gates[:, 3 * H:4 * H])
        c = f * c + i * g
        h = o * jnp.tanh(c)
        return (h, c), None

    h0 = jnp.zeros((B, H), jnp.float32)
    c0 = jnp.zeros((B, H), jnp.float32)
    (h_T, _), _ = jax.lax.scan(step, (h0, c0), x_tbd)
    return h_T


if __name__ == "__main__":
    # small deterministic config (B, input_size, seq_len, hidden)
    B, input_size, seq_len, hidden = 2, 16, 10, 32

    key = jax.random.PRNGKey(0)
    k_x, k_wih, k_whh, k_bih, k_bhh = jax.random.split(key, 5)

    # PyTorch nn.LSTM default init: U(-1/sqrt(H), 1/sqrt(H)) on all params
    bound = 1.0 / jnp.sqrt(jnp.float32(hidden))
    x = jax.random.normal(k_x, (B, input_size, seq_len), dtype=jnp.float32)
    w_ih = jax.random.uniform(k_wih, (4 * hidden, input_size), jnp.float32, -bound, bound)
    w_hh = jax.random.uniform(k_whh, (4 * hidden, hidden), jnp.float32, -bound, bound)
    b_ih = jax.random.uniform(k_bih, (4 * hidden,), jnp.float32, -bound, bound)
    b_hh = jax.random.uniform(k_bhh, (4 * hidden,), jnp.float32, -bound, bound)

    # t_chunk=4 with seq_len=10 exercises multi-chunk time stepping, the back-padded
    # tail (Tp=12) and the mid-chunk exactly-once final-state capture.
    h_pallas = jax.block_until_ready(
        lstm_forward(x, w_ih, w_hh, b_ih, b_hh, t_chunk=4))
    h_ref = jax.block_until_ready(_lstm_reference(x, w_ih, w_hh, b_ih, b_hh))

    assert h_pallas.shape == (B, hidden), h_pallas.shape
    max_err = float(jnp.max(jnp.abs(h_pallas - h_ref)))
    # bf16 weights / x / h-carry with f32 accumulation -> loosened tolerance.
    assert jnp.allclose(h_pallas, h_ref, atol=2e-2, rtol=2e-2), max_err
    print("KERNEL_OK")
</pallas_src>

<mosaic_0001>
module attributes {stable_mosaic.version = 11 : i64} {
  func.func @_lstm_fused_kernel(%arg0: i32, %arg1: i32, %arg2: memref<1x1x64x128xbf16, #tpu.memory_space<vmem>>, %arg3: memref<128x512xbf16, #tpu.memory_space<vmem>>, %arg4: memref<128x512xbf16, #tpu.memory_space<vmem>>, %arg5: memref<1x512xf32, #tpu.memory_space<vmem>>, %arg6: memref<16x128xf32, #tpu.memory_space<vmem>>, %arg7: memref<64x512xf32, #tpu.memory_space<vmem>>, %arg8: memref<16x128xbf16, #tpu.memory_space<vmem>>, %arg9: memref<16x128xf32, #tpu.memory_space<vmem>>) attributes {dimension_semantics = [#tpu.dimension_semantics<parallel>, #tpu.dimension_semantics<arbitrary>], iteration_bounds = array<i64: 1, 3>, scalar_prefetch = 0 : i64, scratch_operands = 3 : i64, tpu.core_type = #tpu.core_type<tc>, window_params = [{transform_indices = @transform_0, window_bounds = array<i64: 1, 1, 64, 128>}, {pipeline_mode = #tpu.pipeline_mode<synchronous>, transform_indices = @transform_1, window_bounds = array<i64: 128, 512>}, {pipeline_mode = #tpu.pipeline_mode<synchronous>, transform_indices = @transform_2, window_bounds = array<i64: 128, 512>}, {pipeline_mode = #tpu.pipeline_mode<synchronous>, transform_indices = @transform_3, window_bounds = array<i64: 1, 512>}, {transform_indices = @transform_4, window_bounds = array<i64: 16, 128>}]} {
    %c0_i32 = arith.constant 0 : i32
    %0 = arith.cmpi eq, %arg1, %c0_i32 : i32
    %1 = arith.extui %0 : i1 to i32
    %c0_i32_0 = arith.constant 0 : i32
    %2 = arith.cmpi ne, %1, %c0_i32_0 : i32
    scf.if %2 {
      %cst_55 = arith.constant 0.000000e+00 : bf16
      %152 = vector.broadcast %cst_55 : bf16 to vector<16x128xbf16>
      %c0_56 = arith.constant 0 : index
      %c0_57 = arith.constant 0 : index
      %153 = vector.load %arg8[%c0_56, %c0_57] : memref<16x128xbf16, #tpu.memory_space<vmem>>, vector<16x128xbf16>
      tpu.vector_store %arg8[%c0_56, %c0_57], %152 {strides = array<i32>} : memref<16x128xbf16, #tpu.memory_space<vmem>>, vector<16x128xbf16>,
      %cst_58 = arith.constant 0.000000e+00 : f32
      %154 = vector.broadcast %cst_58 : f32 to vector<16x128xf32>
      %c0_59 = arith.constant 0 : index
      %c0_60 = arith.constant 0 : index
      %155 = vector.load %arg9[%c0_59, %c0_60] : memref<16x128xf32, #tpu.memory_space<vmem>>, vector<16x128xf32>
      tpu.vector_store %arg9[%c0_59, %c0_60], %154 {strides = array<i32>} : memref<16x128xf32, #tpu.memory_space<vmem>>, vector<16x128xf32>,
    } else {
    }
    %c0 = arith.constant 0 : index
    %c0_1 = arith.constant 0 : index
    %c0_2 = arith.constant 0 : index
    %c0_3 = arith.constant 0 : index
    %3 = vector.load %arg2[%c0, %c0_1, %c0_2, %c0_3] : memref<1x1x64x128xbf16, #tpu.memory_space<vmem>>, vector<1x1x64x128xbf16>
    %4 = vector.shape_cast %3 : vector<1x1x64x128xbf16> to vector<64x128xbf16>
    %c0_4 = arith.constant 0 : index
    %c0_5 = arith.constant 0 : index
    %5 = vector.load %arg3[%c0_4, %c0_5] : memref<128x512xbf16, #tpu.memory_space<vmem>>, vector<128x512xbf16>
    %cst = arith.constant dense<0.000000e+00> : vector<64x512xf32>
    %6 = tpu.matmul %4, %5, %cst {dimension_numbers = #tpu.dot_dimension_numbers<[1], [0], [0], [1], [0, 0, 1, 1], [], []>} : vector<64x128xbf16>, vector<128x512xbf16>, vector<64x512xf32> -> vector<64x512xf32>
    %c0_6 = arith.constant 0 : index
    %c0_7 = arith.constant 0 : index
    %7 = vector.load %arg5[%c0_6, %c0_7] : memref<1x512xf32, #tpu.memory_space<vmem>>, vector<1x512xf32>
    %8 = vector.broadcast %7 : vector<1x512xf32> to vector<64x512xf32>
    %9 = arith.addf %6, %8 : vector<64x512xf32>
    %c0_8 = arith.constant 0 : index
    %c0_9 = arith.constant 0 : index
    %10 = vector.load %arg7[%c0_8, %c0_9] : memref<64x512xf32, #tpu.memory_space<vmem>>, vector<64x512xf32>
    tpu.vector_store %arg7[%c0_8, %c0_9], %9 {strides = array<i32>} : memref<64x512xf32, #tpu.memory_space<vmem>>, vector<64x512xf32>,
    %c4_i32 = arith.constant 4 : i32
    %11 = arith.muli %arg1, %c4_i32 : i32
    %c0_10 = arith.constant 0 : index
    %c0_11 = arith.constant 0 : index
    %12 = vector.load %arg8[%c0_10, %c0_11] : memref<16x128xbf16, #tpu.memory_space<vmem>>, vector<16x128xbf16>
    %c0_12 = arith.constant 0 : index
    %c0_13 = arith.constant 0 : index
    %13 = vector.load %arg9[%c0_12, %c0_13] : memref<16x128xf32, #tpu.memory_space<vmem>>, vector<16x128xf32>
    %c0_14 = arith.constant 0 : index
    %c0_15 = arith.constant 0 : index
    %14 = vector.load %arg7[%c0_14, %c0_15] : memref<64x512xf32, #tpu.memory_space<vmem>>, vector<16x512xf32>
    %c0_16 = arith.constant 0 : index
    %c0_17 = arith.constant 0 : index
    %15 = vector.load %arg4[%c0_16, %c0_17] : memref<128x512xbf16, #tpu.memory_space<vmem>>, vector<128x512xbf16>
    %cst_18 = arith.constant dense<0.000000e+00> : vector<16x512xf32>
    %16 = tpu.matmul %12, %15, %cst_18 {dimension_numbers = #tpu.dot_dimension_numbers<[1], [0], [0], [1], [0, 0, 1, 1], [], []>} : vector<16x128xbf16>, vector<128x512xbf16>, vector<16x512xf32> -> vector<16x512xf32>
    %17 = arith.addf %14, %16 : vector<16x512xf32>
    %18 = vector.extract_strided_slice %17 {offsets = [0, 0], sizes = [16, 128], strides = [1, 1]} : vector<16x512xf32> to vector<16x128xf32>
    %19 = arith.negf %18 : vector<16x128xf32>
    %20 = math.exp %19 : vector<16x128xf32>
    %cst_19 = arith.constant 1.000000e+00 : f32
    %21 = vector.broadcast %cst_19 : f32 to vector<16x128xf32>
    %22 = arith.addf %21, %20 : vector<16x128xf32>
    %23 = arith.divf %21, %22 : vector<16x128xf32>
    %24 = vector.extract_strided_slice %17 {offsets = [0, 128], sizes = [16, 128], strides = [1, 1]} : vector<16x512xf32> to vector<16x128xf32>
    %25 = arith.negf %24 : vector<16x128xf32>
    %26 = math.exp %25 : vector<16x128xf32>
    %cst_20 = arith.constant 1.000000e+00 : f32
    %27 = vector.broadcast %cst_20 : f32 to vector<16x128xf32>
    %28 = arith.addf %27, %26 : vector<16x128xf32>
    %29 = arith.divf %27, %28 : vector<16x128xf32>
    %30 = vector.extract_strided_slice %17 {offsets = [0, 256], sizes = [16, 128], strides = [1, 1]} : vector<16x512xf32> to vector<16x128xf32>
    %31 = math.tanh %30 : vector<16x128xf32>
    %32 = vector.extract_strided_slice %17 {offsets = [0, 384], sizes = [16, 128], strides = [1, 1]} : vector<16x512xf32> to vector<16x128xf32>
    %33 = arith.negf %32 : vector<16x128xf32>
    %34 = math.exp %33 : vector<16x128xf32>
    %cst_21 = arith.constant 1.000000e+00 : f32
    %35 = vector.broadcast %cst_21 : f32 to vector<16x128xf32>
    %36 = arith.addf %35, %34 : vector<16x128xf32>
    %37 = arith.divf %35, %36 : vector<16x128xf32>
    %38 = arith.mulf %29, %13 : vector<16x128xf32>
    %39 = arith.mulf %23, %31 : vector<16x128xf32>
    %40 = arith.addf %38, %39 : vector<16x128xf32>
    %41 = math.tanh %40 : vector<16x128xf32>
    %42 = arith.mulf %37, %41 : vector<16x128xf32>
    %c0_i32_22 = arith.constant 0 : i32
    %43 = arith.addi %11, %c0_i32_22 : i32
    %c9_i32 = arith.constant 9 : i32
    %44 = arith.cmpi eq, %43, %c9_i32 : i32
    %45 = arith.extui %44 : i1 to i32
    %c0_i32_23 = arith.constant 0 : i32
    %46 = arith.cmpi ne, %45, %c0_i32_23 : i32
    scf.if %46 {
      %c0_55 = arith.constant 0 : index
      %c0_56 = arith.constant 0 : index
      %152 = vector.load %arg6[%c0_55, %c0_56] : memref<16x128xf32, #tpu.memory_space<vmem>>, vector<16x128xf32>
      tpu.vector_store %arg6[%c0_55, %c0_56], %42 {strides = array<i32>} : memref<16x128xf32, #tpu.memory_space<vmem>>, vector<16x128xf32>,
    } else {
    }
    %47 = arith.truncf %42 : vector<16x128xf32> to vector<16x128xbf16>
    %c16 = arith.constant 16 : index
    %c0_24 = arith.constant 0 : index
    %48 = vector.load %arg7[%c16, %c0_24] : memref<64x512xf32, #tpu.memory_space<vmem>>, vector<16x512xf32>
    %c0_25 = arith.constant 0 : index
    %c0_26 = arith.constant 0 : index
    %49 = vector.load %arg4[%c0_25, %c0_26] : memref<128x512xbf16, #tpu.memory_space<vmem>>, vector<128x512xbf16>
    %cst_27 = arith.constant dense<0.000000e+00> : vector<16x512xf32>
    %50 = tpu.matmul %47, %49, %cst_27 {dimension_numbers = #tpu.dot_dimension_numbers<[1], [0], [0], [1], [0, 0, 1, 1], [], []>} : vector<16x128xbf16>, vector<128x512xbf16>, vector<16x512xf32> -> vector<16x512xf32>
    %51 = arith.addf %48, %50 : vector<16x512xf32>
    %52 = vector.extract_strided_slice %51 {offsets = [0, 0], sizes = [16, 128], strides = [1, 1]} : vector<16x512xf32> to vector<16x128xf32>
    %53 = arith.negf %52 : vector<16x128xf32>
    %54 = math.exp %53 : vector<16x128xf32>
    %cst_28 = arith.constant 1.000000e+00 : f32
    %55 = vector.broadcast %cst_28 : f32 to vector<16x128xf32>
    %56 = arith.addf %55, %54 : vector<16x128xf32>
    %57 = arith.divf %55, %56 : vector<16x128xf32>
    %58 = vector.extract_strided_slice %51 {offsets = [0, 128], sizes = [16, 128], strides = [1, 1]} : vector<16x512xf32> to vector<16x128xf32>
    %59 = arith.negf %58 : vector<16x128xf32>
    %60 = math.exp %59 : vector<16x128xf32>
    %cst_29 = arith.constant 1.000000e+00 : f32
    %61 = vector.broadcast %cst_29 : f32 to vector<16x128xf32>
    %62 = arith.addf %61, %60 : vector<16x128xf32>
    %63 = arith.divf %61, %62 : vector<16x128xf32>
    %64 = vector.extract_strided_slice %51 {offsets = [0, 256], sizes = [16, 128], strides = [1, 1]} : vector<16x512xf32> to vector<16x128xf32>
    %65 = math.tanh %64 : vector<16x128xf32>
    %66 = vector.extract_strided_slice %51 {offsets = [0, 384], sizes = [16, 128], strides = [1, 1]} : vector<16x512xf32> to vector<16x128xf32>
    %67 = arith.negf %66 : vector<16x128xf32>
    %68 = math.exp %67 : vector<16x128xf32>
    %cst_30 = arith.constant 1.000000e+00 : f32
    %69 = vector.broadcast %cst_30 : f32 to vector<16x128xf32>
    %70 = arith.addf %69, %68 : vector<16x128xf32>
    %71 = arith.divf %69, %70 : vector<16x128xf32>
    %72 = arith.mulf %63, %40 : vector<16x128xf32>
    %73 = arith.mulf %57, %65 : vector<16x128xf32>
    %74 = arith.addf %72, %73 : vector<16x128xf32>
    %75 = math.tanh %74 : vector<16x128xf32>
    %76 = arith.mulf %71, %75 : vector<16x128xf32>
    %c1_i32 = arith.constant 1 : i32
    %77 = arith.addi %11, %c1_i32 : i32
    %c9_i32_31 = arith.constant 9 : i32
    %78 = arith.cmpi eq, %77, %c9_i32_31 : i32
    %79 = arith.extui %78 : i1 to i32
    %c0_i32_32 = arith.constant 0 : i32
    %80 = arith.cmpi ne, %79, %c0_i32_32 : i32
    scf.if %80 {
      %c0_55 = arith.constant 0 : index
      %c0_56 = arith.constant 0 : index
      %152 = vector.load %arg6[%c0_55, %c0_56] : memref<16x128xf32, #tpu.memory_space<vmem>>, vector<16x128xf32>
      tpu.vector_store %arg6[%c0_55, %c0_56], %76 {strides = array<i32>} : memref<16x128xf32, #tpu.memory_space<vmem>>, vector<16x128xf32>,
    } else {
    }
    %81 = arith.truncf %76 : vector<16x128xf32> to vector<16x128xbf16>
    %c32 = arith.constant 32 : index
    %c0_33 = arith.constant 0 : index
    %82 = vector.load %arg7[%c32, %c0_33] : memref<64x512xf32, #tpu.memory_space<vmem>>, vector<16x512xf32>
    %c0_34 = arith.constant 0 : index
    %c0_35 = arith.constant 0 : index
    %83 = vector.load %arg4[%c0_34, %c0_35] : memref<128x512xbf16, #tpu.memory_space<vmem>>, vector<128x512xbf16>
    %cst_36 = arith.constant dense<0.000000e+00> : vector<16x512xf32>
    %84 = tpu.matmul %81, %83, %cst_36 {dimension_numbers = #tpu.dot_dimension_numbers<[1], [0], [0], [1], [0, 0, 1, 1], [], []>} : vector<16x128xbf16>, vector<128x512xbf16>, vector<16x512xf32> -> vector<16x512xf32>
    %85 = arith.addf %82, %84 : vector<16x512xf32>
    %86 = vector.extract_strided_slice %85 {offsets = [0, 0], sizes = [16, 128], strides = [1, 1]} : vector<16x512xf32> to vector<16x128xf32>
    %87 = arith.negf %86 : vector<16x128xf32>
    %88 = math.exp %87 : vector<16x128xf32>
    %cst_37 = arith.constant 1.000000e+00 : f32
    %89 = vector.broadcast %cst_37 : f32 to vector<16x128xf32>
    %90 = arith.addf %89, %88 : vector<16x128xf32>
    %91 = arith.divf %89, %90 : vector<16x128xf32>
    %92 = vector.extract_strided_slice %85 {offsets = [0, 128], sizes = [16, 128], strides = [1, 1]} : vector<16x512xf32> to vector<16x128xf32>
    %93 = arith.negf %92 : vector<16x128xf32>
    %94 = math.exp %93 : vector<16x128xf32>
    %cst_38 = arith.constant 1.000000e+00 : f32
    %95 = vector.broadcast %cst_38 : f32 to vector<16x128xf32>
    %96 = arith.addf %95, %94 : vector<16x128xf32>
    %97 = arith.divf %95, %96 : vector<16x128xf32>
    %98 = vector.extract_strided_slice %85 {offsets = [0, 256], sizes = [16, 128], strides = [1, 1]} : vector<16x512xf32> to vector<16x128xf32>
    %99 = math.tanh %98 : vector<16x128xf32>
    %100 = vector.extract_strided_slice %85 {offsets = [0, 384], sizes = [16, 128], strides = [1, 1]} : vector<16x512xf32> to vector<16x128xf32>
    %101 = arith.negf %100 : vector<16x128xf32>
    %102 = math.exp %101 : vector<16x128xf32>
    %cst_39 = arith.constant 1.000000e+00 : f32
    %103 = vector.broadcast %cst_39 : f32 to vector<16x128xf32>
    %104 = arith.addf %103, %102 : vector<16x128xf32>
    %105 = arith.divf %103, %104 : vector<16x128xf32>
    %106 = arith.mulf %97, %74 : vector<16x128xf32>
    %107 = arith.mulf %91, %99 : vector<16x128xf32>
    %108 = arith.addf %106, %107 : vector<16x128xf32>
    %109 = math.tanh %108 : vector<16x128xf32>
    %110 = arith.mulf %105, %109 : vector<16x128xf32>
    %c2_i32 = arith.constant 2 : i32
    %111 = arith.addi %11, %c2_i32 : i32
    %c9_i32_40 = arith.constant 9 : i32
    %112 = arith.cmpi eq, %111, %c9_i32_40 : i32
    %113 = arith.extui %112 : i1 to i32
    %c0_i32_41 = arith.constant 0 : i32
    %114 = arith.cmpi ne, %113, %c0_i32_41 : i32
    scf.if %114 {
      %c0_55 = arith.constant 0 : index
      %c0_56 = arith.constant 0 : index
      %152 = vector.load %arg6[%c0_55, %c0_56] : memref<16x128xf32, #tpu.memory_space<vmem>>, vector<16x128xf32>
      tpu.vector_store %arg6[%c0_55, %c0_56], %110 {strides = array<i32>} : memref<16x128xf32, #tpu.memory_space<vmem>>, vector<16x128xf32>,
    } else {
    }
    %115 = arith.truncf %110 : vector<16x128xf32> to vector<16x128xbf16>
    %c48 = arith.constant 48 : index
    %c0_42 = arith.constant 0 : index
    %116 = vector.load %arg7[%c48, %c0_42] : memref<64x512xf32, #tpu.memory_space<vmem>>, vector<16x512xf32>
    %c0_43 = arith.constant 0 : index
    %c0_44 = arith.constant 0 : index
    %117 = vector.load %arg4[%c0_43, %c0_44] : memref<128x512xbf16, #tpu.memory_space<vmem>>, vector<128x512xbf16>
    %cst_45 = arith.constant dense<0.000000e+00> : vector<16x512xf32>
    %118 = tpu.matmul %115, %117, %cst_45 {dimension_numbers = #tpu.dot_dimension_numbers<[1], [0], [0], [1], [0, 0, 1, 1], [], []>} : vector<16x128xbf16>, vector<128x512xbf16>, vector<16x512xf32> -> vector<16x512xf32>
    %119 = arith.addf %116, %118 : vector<16x512xf32>
    %120 = vector.extract_strided_slice %119 {offsets = [0, 0], sizes = [16, 128], strides = [1, 1]} : vector<16x512xf32> to vector<16x128xf32>
    %121 = arith.negf %120 : vector<16x128xf32>
    %122 = math.exp %121 : vector<16x128xf32>
    %cst_46 = arith.constant 1.000000e+00 : f32
    %123 = vector.broadcast %cst_46 : f32 to vector<16x128xf32>
    %124 = arith.addf %123, %122 : vector<16x128xf32>
    %125 = arith.divf %123, %124 : vector<16x128xf32>
    %126 = vector.extract_strided_slice %119 {offsets = [0, 128], sizes = [16, 128], strides = [1, 1]} : vector<16x512xf32> to vector<16x128xf32>
    %127 = arith.negf %126 : vector<16x128xf32>
    %128 = math.exp %127 : vector<16x128xf32>
    %cst_47 = arith.constant 1.000000e+00 : f32
    %129 = vector.broadcast %cst_47 : f32 to vector<16x128xf32>
    %130 = arith.addf %129, %128 : vector<16x128xf32>
    %131 = arith.divf %129, %130 : vector<16x128xf32>
    %132 = vector.extract_strided_slice %119 {offsets = [0, 256], sizes = [16, 128], strides = [1, 1]} : vector<16x512xf32> to vector<16x128xf32>
    %133 = math.tanh %132 : vector<16x128xf32>
    %134 = vector.extract_strided_slice %119 {offsets = [0, 384], sizes = [16, 128], strides = [1, 1]} : vector<16x512xf32> to vector<16x128xf32>
    %135 = arith.negf %134 : vector<16x128xf32>
    %136 = math.exp %135 : vector<16x128xf32>
    %cst_48 = arith.constant 1.000000e+00 : f32
    %137 = vector.broadcast %cst_48 : f32 to vector<16x128xf32>
    %138 = arith.addf %137, %136 : vector<16x128xf32>
    %139 = arith.divf %137, %138 : vector<16x128xf32>
    %140 = arith.mulf %131, %108 : vector<16x128xf32>
    %141 = arith.mulf %125, %133 : vector<16x128xf32>
    %142 = arith.addf %140, %141 : vector<16x128xf32>
    %143 = math.tanh %142 : vector<16x128xf32>
    %144 = arith.mulf %139, %143 : vector<16x128xf32>
    %c3_i32 = arith.constant 3 : i32
    %145 = arith.addi %11, %c3_i32 : i32
    %c9_i32_49 = arith.constant 9 : i32
    %146 = arith.cmpi eq, %145, %c9_i32_49 : i32
    %147 = arith.extui %146 : i1 to i32
    %c0_i32_50 = arith.constant 0 : i32
    %148 = arith.cmpi ne, %147, %c0_i32_50 : i32
    scf.if %148 {
      %c0_55 = arith.constant 0 : index
      %c0_56 = arith.constant 0 : index
      %152 = vector.load %arg6[%c0_55, %c0_56] : memref<16x128xf32, #tpu.memory_space<vmem>>, vector<16x128xf32>
      tpu.vector_store %arg6[%c0_55, %c0_56], %144 {strides = array<i32>} : memref<16x128xf32, #tpu.memory_space<vmem>>, vector<16x128xf32>,
    } else {
    }
    %149 = arith.truncf %144 : vector<16x128xf32> to vector<16x128xbf16>
    %c0_51 = arith.constant 0 : index
    %c0_52 = arith.constant 0 : index
    %150 = vector.load %arg8[%c0_51, %c0_52] : memref<16x128xbf16, #tpu.memory_space<vmem>>, vector<16x128xbf16>
    tpu.vector_store %arg8[%c0_51, %c0_52], %149 {strides = array<i32>} : memref<16x128xbf16, #tpu.memory_space<vmem>>, vector<16x128xbf16>,
    %c0_53 = arith.constant 0 : index
    %c0_54 = arith.constant 0 : index
    %151 = vector.load %arg9[%c0_53, %c0_54] : memref<16x128xf32, #tpu.memory_space<vmem>>, vector<16x128xf32>
    tpu.vector_store %arg9[%c0_53, %c0_54], %142 {strides = array<i32>} : memref<16x128xf32, #tpu.memory_space<vmem>>, vector<16x128xf32>,
    return
  }
  func.func @transform_0(%arg0: i32, %arg1: i32) -> (i32, i32, i32, i32) {
    %c0_i32 = arith.constant 0 : i32
    %c0_i32_0 = arith.constant 0 : i32
    %c0_i32_1 = arith.constant 0 : i32
    return %arg1, %arg0, %c0_i32, %c0_i32_0 : i32, i32, i32, i32
  }
  func.func @transform_1(%arg0: i32, %arg1: i32) -> (i32, i32) {
    %c0_i32 = arith.constant 0 : i32
    %c0_i32_0 = arith.constant 0 : i32
    %c0_i32_1 = arith.constant 0 : i32
    return %c0_i32, %c0_i32_0 : i32, i32
  }
  func.func @transform_2(%arg0: i32, %arg1: i32) -> (i32, i32) {
    %c0_i32 = arith.constant 0 : i32
    %c0_i32_0 = arith.constant 0 : i32
    %c0_i32_1 = arith.constant 0 : i32
    return %c0_i32, %c0_i32_0 : i32, i32
  }
  func.func @transform_3(%arg0: i32, %arg1: i32) -> (i32, i32) {
    %c0_i32 = arith.constant 0 : i32
    %c0_i32_0 = arith.constant 0 : i32
    %c0_i32_1 = arith.constant 0 : i32
    return %c0_i32, %c0_i32_0 : i32, i32
  }
  func.func @transform_4(%arg0: i32, %arg1: i32) -> (i32, i32) {
    %c0_i32 = arith.constant 0 : i32
    %c0_i32_0 = arith.constant 0 : i32
    return %arg0, %c0_i32 : i32, i32
  }
}

</mosaic_0001>

<llo_original>
// kernel: tpu_custom_call.1
$region0: #{tpu_custom_call.1}
  #allocation0 [shape = 'u32[]', space=smem, size = 0x4, offset = 0x4, fixed_abs, tag = 'smem constant byte address 0x4 - core index']
  #allocation1 [shape = 'u32[144,128]{1,0:T(1,128)}', space=vmem, size = 0x12000, scoped, tag = 'internal scratch']
  #allocation2 [shape = 'f32[64,512]{1,0:T(8,128)}', space=vmem, size = 0x20000, scoped, tag = 'scratch operand']
  #allocation3 [shape = 'bf16[16,128]{1,0:T(8,128)(2,1)}', space=vmem, size = 0x1000, scoped, tag = 'scratch operand']
  #allocation4 [shape = 'f32[16,128]{1,0:T(8,128)}', space=vmem, size = 0x2000, scoped, tag = 'scratch operand']
  %s0 = inlined_call_operand.hbm [shape: bf16[3,1,64,128], index: 0, kind: input, shape index: {}]
  %s1 = inlined_call_operand.hbm [shape: bf16[128,512], index: 1, kind: input, shape index: {}]
  %s2 = inlined_call_operand.hbm [shape: bf16[128,512], index: 2, kind: input, shape index: {}]
  %s3 = inlined_call_operand.vmem [shape: f32[1,512], index: 3, kind: input, shape index: {}]
  %s4 = inlined_call_operand.hbm [shape: f32[16,128], index: 4, kind: output, shape index: {}]
  %s5 = sld [smem:[#allocation0]]
  $region81: #{tpu_custom_call.1} parent=0
    _
  %s7 = ssub.s32 1, %s5
  %s8 = scalar_select 0, %s7, %s5
  $region1: #{tpu_custom_call.1} parent=0
    #allocation5 [shape = 'u8[32768]{0}', space=vmem, size = 0x8000, scoped, tag = 'input window, operand 0']
    #allocation6 [shape = 's32[2]{0}', space=sflag, size = 0x8, scoped, tag = 'scoped memory for tpu_custom_call.1']
    #allocation7 [shape = 's32[2]{0}', space=sflag, size = 0x8, scoped, tag = 'scoped memory for tpu_custom_call.1']
    #allocation8 [shape = 'u8[131072]{0}', space=vmem, size = 0x20000, scoped, tag = 'input window, operand 1, single buffered']
    #allocation9 [shape = 's32[1]{0}', space=sflag, size = 0x4, scoped, tag = 'scoped memory for tpu_custom_call.1']
    #allocation10 [shape = 'u8[131072]{0}', space=vmem, size = 0x20000, scoped, tag = 'input window, operand 2, single buffered']
    #allocation11 [shape = 'u8[8192]{0}', space=vmem, size = 0x2000, scoped, tag = 'output window, operand 0, single buffered']
    %9 = vsyncpa [#allocation6], 0
    %s10 = scalar_lea.sflag [#allocation6], 1
    %11 = vsyncpa %s10, 0
    %12 = vsyncpa [#allocation9], 0
    %13 = vsyncpa [#allocation7], 0
    loop: start=0, step=1, limit=5
    $region2: #{tpu_custom_call.1} parent=1 // loop_pre_header
      _
    $region3: #{tpu_custom_call.1} parent=1 // loop_header
      %s15 = sphi 0, %s19
      %p16 = scmp.ge.s32.totalorder %s15, 5
      %s22 = sphi 0, %s34
      %s23 = sphi 0, %s30
      %s24 = sphi 0, %s22
      %s25 = sphi 0, %s23
      %s26 = sphi 0, %s24
      %s27 = sphi 0, %s25
      %s39 = sphi 0, %s41
      %s42 = sphi 0, %s39
      %s43 = sphi 0, %s42
      %s59 = sphi 0, %s43
      %s63 = sphi 0, %s63
      %s65 = sphi 0, %s63
      %s66 = sphi 0, %s65
      %s80 = sphi 0, %s66
      %s84 = sphi 0, %s84
      %s86 = sphi 0, %s84
      %s87 = sphi 0, %s86
      %s101 = sphi 0, %s87
      %s105 = sphi 0, %s105
      %s107 = sphi 0, %s105
      %s108 = sphi 0, %s107
      %s122 = sphi 0, %s108
      %s128 = sphi 0, %s130
      %s131 = sphi 0, %s128
      %s132 = sphi 0, %s131
      %s148 = sphi 0, %s132
    $region4: #{tpu_custom_call.1} parent=1 // loop_header_branch
      %18 = sbr.rel (%p16) target = $region8
    $region5: #{tpu_custom_call.1} parent=1 // loop_body
      %s20 = ssub.s32 %s15, 1
      %s21 = ssub.s32 %s15, 2
      %s28 = sadd.s32 1, %s23
      %p29 = scmp.ge.s32.totalorder %s28, 3
      %s30 = scalar_select %p29, 0, %s28
      %s31 = sadd.s32 1, %s22
      %s32 = scalar_select %p29, %s31, %s22
      %p33 = scmp.ge.s32.totalorder %s32, 1
      %s34 = scalar_select %p33, 0, %s32
      %s35 = ssub.s32 %s23, %s30
      %s36 = ssub.s32 %s22, %s34
      %s37 = sor.u32 %s35, %s36
      %p38 = scmp.eq.s32.totalorder %s37, 0
      %s40 = sadd.s32 %s39, 1
      %s41 = scalar_select %p38, %s39, %s40
      %p44 = pneg %p38
      %p45 = scmp.eq.s32.totalorder %s15, 2
      %p46 = por %p44, %p45
      %p47 = scmp.ne.s32.totalorder %s39, %s42
      %p48 = scmp.eq.s32.totalorder %s15, 0
      %p49 = por %p47, %p48
      %p50 = scmp.ne.s32.totalorder %s39, %s42
      %p51 = scmp.eq.s32.totalorder %s20, 2
      %p52 = por %p50, %p51
      %p53 = scmp.ne.s32.totalorder %s42, %s43
      %p54 = scmp.eq.s32.totalorder %s20, 0
      %p55 = por %p53, %p54
      %p56 = scmp.ne.s32.totalorder %s42, %s43
      %p57 = scmp.eq.s32.totalorder %s21, 2
      %p58 = por %p56, %p57
      %p60 = scmp.ne.s32.totalorder %s43, %s59
      %p61 = scmp.eq.s32.totalorder %s21, 0
      %p62 = por %p60, %p61
      %s64 = sadd.s32 %s63, 1
      %p67 = scmp.eq.s32.totalorder %s15, 2
      %p68 = scmp.ne.s32.totalorder %s63, %s65
      %p69 = scmp.eq.s32.totalorder %s15, 0
      %p70 = por %p68, %p69
      %p71 = scmp.ne.s32.totalorder %s63, %s65
      %p72 = scmp.eq.s32.totalorder %s20, 2
      %p73 = por %p71, %p72
      %p74 = scmp.ne.s32.totalorder %s65, %s66
      %p75 = scmp.eq.s32.totalorder %s20, 0
      %p76 = por %p74, %p75
      %p77 = scmp.ne.s32.totalorder %s65, %s66
      %p78 = scmp.eq.s32.totalorder %s21, 2
      %p79 = por %p77, %p78
      %p81 = scmp.ne.s32.totalorder %s66, %s80
      %p82 = scmp.eq.s32.totalorder %s21, 0
      %p83 = por %p81, %p82
      %s85 = sadd.s32 %s84, 1
      %p88 = scmp.eq.s32.totalorder %s15, 2
      %p89 = scmp.ne.s32.totalorder %s84, %s86
      %p90 = scmp.eq.s32.totalorder %s15, 0
      %p91 = por %p89, %p90
      %p92 = scmp.ne.s32.totalorder %s84, %s86
      %p93 = scmp.eq.s32.totalorder %s20, 2
      %p94 = por %p92, %p93
      %p95 = scmp.ne.s32.totalorder %s86, %s87
      %p96 = scmp.eq.s32.totalorder %s20, 0
      %p97 = por %p95, %p96
      %p98 = scmp.ne.s32.totalorder %s86, %s87
      %p99 = scmp.eq.s32.totalorder %s21, 2
      %p100 = por %p98, %p99
      %p102 = scmp.ne.s32.totalorder %s87, %s101
      %p103 = scmp.eq.s32.totalorder %s21, 0
      %p104 = por %p102, %p103
      %s106 = sadd.s32 %s105, 1
      %p109 = scmp.eq.s32.totalorder %s15, 2
      %p110 = scmp.ne.s32.totalorder %s105, %s107
      %p111 = scmp.eq.s32.totalorder %s15, 0
      %p112 = por %p110, %p111
      %p113 = scmp.ne.s32.totalorder %s105, %s107
      %p114 = scmp.eq.s32.totalorder %s20, 2
      %p115 = por %p113, %p114
      %p116 = scmp.ne.s32.totalorder %s107, %s108
      %p117 = scmp.eq.s32.totalorder %s20, 0
      %p118 = por %p116, %p117
      %p119 = scmp.ne.s32.totalorder %s107, %s108
      %p120 = scmp.eq.s32.totalorder %s21, 2
      %p121 = por %p119, %p120
      %p123 = scmp.ne.s32.totalorder %s108, %s122
      %p124 = scmp.eq.s32.totalorder %s21, 0
      %p125 = por %p123, %p124
      %s126 = ssub.s32 %s22, %s34
      %p127 = scmp.eq.s32.totalorder %s126, 0
      %s129 = sadd.s32 %s128, 1
      %s130 = scalar_select %p127, %s128, %s129
      %p133 = pneg %p127
      %p134 = scmp.eq.s32.totalorder %s15, 2
      %p135 = por %p133, %p134
      %p136 = scmp.ne.s32.totalorder %s128, %s131
      %p137 = scmp.eq.s32.totalorder %s15, 0
      %p138 = por %p136, %p137
      %p139 = scmp.ne.s32.totalorder %s128, %s131
      %p140 = scmp.eq.s32.totalorder %s20, 2
      %p141 = por %p139, %p140
      %p142 = scmp.ne.s32.totalorder %s131, %s132
      %p143 = scmp.eq.s32.totalorder %s20, 0
      %p144 = por %p142, %p143
      %p145 = scmp.ne.s32.totalorder %s131, %s132
      %p146 = scmp.eq.s32.totalorder %s21, 2
      %p147 = por %p145, %p146
      %p149 = scmp.ne.s32.totalorder %s132, %s148
      %p150 = scmp.eq.s32.totalorder %s21, 0
      %p151 = por %p149, %p150
      %p152 = scmp.le.s32.totalorder 1, %s15
      %p153 = scmp.lt.s32.totalorder %s15, 4
      %p154 = pnand %p152, %p153
      %p155 = pneg %p154
      // Predicated region
      $region9: #{tpu_custom_call.1} parent=5 // pred_check
        _
      $region10: #{tpu_custom_call.1} parent=5 // pred_check_branch
        %157 = sbr.rel (%p154) target = $region12
      $region11: #{tpu_custom_call.1} parent=5 // pred_region
        %s158 = ssub.s32 %s15, 1
        // Predicated region
        $region13: #{tpu_custom_call.1} parent=11 // pred_check
          %p159 = pneg %p76
        $region14: #{tpu_custom_call.1} parent=11 // pred_check_branch
          %161 = sbr.rel (%p159) target = $region16
        $region15: #{tpu_custom_call.1} parent=11 // pred_region
          %s163 = ssub.s32 4096, 4096
          %164 = vsyncadd [#allocation9], %s163
          %s165 = sshll.u32 [#allocation8], 4
          %s166 = int_to_ptr.vmem [resolvable:$true] %s165
          %171 = dma.hbm_to_vmem [thread:$0]  %s1, 4096, %s166, [#allocation9], 256, 256, 16
        $region16: #{tpu_custom_call.1} parent=11 // pred_fallthru
          _
        // Predicated region
        $region17: #{tpu_custom_call.1} parent=11 // pred_check
          %p172 = pneg %p97
        $region18: #{tpu_custom_call.1} parent=11 // pred_check_branch
          %174 = sbr.rel (%p172) target = $region20
        $region19: #{tpu_custom_call.1} parent=11 // pred_region
          %s176 = ssub.s32 4096, 4096
          %177 = vsyncadd [#allocation9], %s176
          %s178 = sshll.u32 [#allocation10], 4
          %s179 = int_to_ptr.vmem [resolvable:$true] %s178
          %184 = dma.hbm_to_vmem [thread:$0]  %s2, 4096, %s179, [#allocation9], 256, 256, 16
        $region20: #{tpu_custom_call.1} parent=11 // pred_fallthru
          _
        // Predicated region
        $region21: #{tpu_custom_call.1} parent=11 // pred_check
          %p185 = pneg %p118
        $region22: #{tpu_custom_call.1} parent=11 // pred_check_branch
          %187 = sbr.rel (%p185) target = $region24
        $region23: #{tpu_custom_call.1} parent=11 // pred_region
          _
        $region24: #{tpu_custom_call.1} parent=11 // pred_fallthru
          _
      $region12: #{tpu_custom_call.1} parent=5 // pred_fallthru
        _
      %p188 = scmp.lt.s32.totalorder %s15, 3
      // Predicated region
      $region25: #{tpu_custom_call.1} parent=5 // pred_check
        %p189 = pneg %p188
      $region26: #{tpu_custom_call.1} parent=5 // pred_check_branch
        %191 = sbr.rel (%p189) target = $region28
      $region27: #{tpu_custom_call.1} parent=5 // pred_region
        // Predicated region
        $region29: #{tpu_custom_call.1} parent=27 // pred_check
          %p192 = pneg %p49
        $region30: #{tpu_custom_call.1} parent=27 // pred_check_branch
          %194 = sbr.rel (%p192) target = $region32
        $region31: #{tpu_custom_call.1} parent=27 // pred_region
          %s195 = sand.u32 %s39, 1
          %s196 = scalar_lea.sflag [#allocation6], %s195
          %s197 = sand.u32 %s39, 1
          %s198 = smul.addr %s197, 32
          %s199 = scalar_lea.vmem [#allocation5], %s198
          %s201 = ssub.s32 512, 512
          %202 = vsyncadd %s196, %s201
          %s203 = smul.addr %s22, 8
          %s204 = smul.addr %s23, 8
          %s205 = sadd.s32 %s203, %s204
          %s206 = smul.addr %s205, 64
          %s207 = scalar_lea.hbm %s0, %s206
          %s208 = sshll.u32 %s199, 4
          %s209 = int_to_ptr.vmem [resolvable:$true] %s208
          %214 = dma.hbm_to_vmem [thread:$0]  %s207, 512, %s209, %s196, 64, 64, 4
        $region32: #{tpu_custom_call.1} parent=27 // pred_fallthru
          _
      $region28: #{tpu_custom_call.1} parent=5 // pred_fallthru
        _
      %p215 = scmp.le.s32.totalorder 1, %s15
      %p216 = scmp.lt.s32.totalorder %s15, 4
      %p217 = pnand %p215, %p216
      %p218 = pneg %p217
      // Predicated region
      $region33: #{tpu_custom_call.1} parent=5 // pred_check
        _
      $region34: #{tpu_custom_call.1} parent=5 // pred_check_branch
        %220 = sbr.rel (%p217) target = $region36
      $region35: #{tpu_custom_call.1} parent=5 // pred_region
        %s221 = ssub.s32 %s15, 1
        %s222 = sand.u32 %s42, 1
        %s223 = scalar_lea.sflag [#allocation6], %s222
        %s224 = sand.u32 %s42, 1
        %s225 = smul.addr %s224, 32
        %s226 = scalar_lea.vmem [#allocation5], %s225
        // Predicated region
        $region37: #{tpu_custom_call.1} parent=35 // pred_check
          %p227 = pneg %p55
        $region38: #{tpu_custom_call.1} parent=35 // pred_check_branch
          %229 = sbr.rel (%p227) target = $region40
        $region39: #{tpu_custom_call.1} parent=35 // pred_region
          %230 = dma.done %s223, 512
        $region40: #{tpu_custom_call.1} parent=35 // pred_fallthru
          _
        // Predicated region
        $region41: #{tpu_custom_call.1} parent=35 // pred_check
          %p231 = pneg %p76
        $region42: #{tpu_custom_call.1} parent=35 // pred_check_branch
          %233 = sbr.rel (%p231) target = $region44
        $region43: #{tpu_custom_call.1} parent=35 // pred_region
          %234 = dma.done [#allocation9], 4096
        $region44: #{tpu_custom_call.1} parent=35 // pred_fallthru
          _
        // Predicated region
        $region45: #{tpu_custom_call.1} parent=35 // pred_check
          %p235 = pneg %p97
        $region46: #{tpu_custom_call.1} parent=35 // pred_check_branch
          %237 = sbr.rel (%p235) target = $region48
        $region47: #{tpu_custom_call.1} parent=35 // pred_region
          %238 = dma.done [#allocation9], 4096
        $region48: #{tpu_custom_call.1} parent=35 // pred_fallthru
          _
        %s239 = sand.u32 %s42, 1
        %s240 = scalar_lea.sflag [#allocation6], %s239
        %s241 = sand.u32 %s42, 1
        %s242 = smul.addr %s241, 32
        %s243 = scalar_lea.vmem [#allocation5], %s242
        %p244 = pneg %p55
        %p245 = pneg %p52
        %p246 = pneg %p76
        %p247 = pneg %p73
        %p248 = pneg %p97
        %p249 = pneg %p94
        %p250 = pneg %p118
        %p251 = pneg %p115
        %p252 = pneg %p144
        %p253 = pneg %p141
        %s254 = smul.u32 2, %s24
        %p256 = scmp.eq.s32.totalorder %s25, 0
        // Predicated region
        $region49: #{tpu_custom_call.1} parent=35 // pred_check
          %p257 = pneg %p256
        $region50: #{tpu_custom_call.1} parent=35 // pred_check_branch
          %259 = sbr.rel (%p257) target = $region52
        $region51: #{tpu_custom_call.1} parent=35 // pred_region
          %260 = vst [vmem:[#allocation3] sm:$0xf] 0
          %261 = vst [vmem:[#allocation3 + $0x4] sm:$0xf] 0
          %262 = vst [vmem:[#allocation4] sm:$0xff] 0.0
          %263 = vst [vmem:[#allocation4 + $0x8] sm:$0xff] 0.0
        $region52: #{tpu_custom_call.1} parent=35 // pred_fallthru
          _
        %v264 = vld [vmem:[%s226] sm:$0xf]
        %v265 = vld [vmem:[%s226 + $0x4] sm:$0xf]
        %v266 = vld [vmem:[%s226 + $0x8] sm:$0xf]
        %v267 = vld [vmem:[%s226 + $0xc] sm:$0xf]
        %v268 = vld [vmem:[%s226 + $0x10] sm:$0xf]
        %v269 = vld [vmem:[%s226 + $0x14] sm:$0xf]
        %v270 = vld [vmem:[%s226 + $0x18] sm:$0xf]
        %v271 = vld [vmem:[%s226 + $0x1c] sm:$0xf]
        %v272 = vld [vmem:[#allocation8] sm:$0xff]
        %v273 = vld [vmem:[#allocation8 + $0x8] sm:$0xff]
        %v274 = vld [vmem:[#allocation8 + $0x10] sm:$0xff]
        %v275 = vld [vmem:[#allocation8 + $0x18] sm:$0xff]
        %v276 = vld [vmem:[#allocation8 + $0x20] sm:$0xff]
        %v277 = vld [vmem:[#allocation8 + $0x28] sm:$0xff]
        %v278 = vld [vmem:[#allocation8 + $0x30] sm:$0xff]
        %v279 = vld [vmem:[#allocation8 + $0x38] sm:$0xff]
        %v280 = vld [vmem:[#allocation8 + $0x40] sm:$0xff]
        %v281 = vld [vmem:[#allocation8 + $0x48] sm:$0xff]
        %v282 = vld [vmem:[#allocation8 + $0x50] sm:$0xff]
        %v283 = vld [vmem:[#allocation8 + $0x58] sm:$0xff]
        %v284 = vld [vmem:[#allocation8 + $0x60] sm:$0xff]
        %v285 = vld [vmem:[#allocation8 + $0x68] sm:$0xff]
        %v286 = vld [vmem:[#allocation8 + $0x70] sm:$0xff]
        %v287 = vld [vmem:[#allocation8 + $0x78] sm:$0xff]
        %v288 = vld [vmem:[#allocation8 + $0x80] sm:$0xff]
        %v289 = vld [vmem:[#allocation8 + $0x88] sm:$0xff]
        %v290 = vld [vmem:[#allocation8 + $0x90] sm:$0xff]
        %v291 = vld [vmem:[#allocation8 + $0x98] sm:$0xff]
        %v292 = vld [vmem:[#allocation8 + $0xa0] sm:$0xff]
        %v293 = vld [vmem:[#allocation8 + $0xa8] sm:$0xff]
        %v294 = vld [vmem:[#allocation8 + $0xb0] sm:$0xff]
        %v295 = vld [vmem:[#allocation8 + $0xb8] sm:$0xff]
        %v296 = vld [vmem:[#allocation8 + $0xc0] sm:$0xff]
        %v297 = vld [vmem:[#allocation8 + $0xc8] sm:$0xff]
        %v298 = vld [vmem:[#allocation8 + $0xd0] sm:$0xff]
        %v299 = vld [vmem:[#allocation8 + $0xd8] sm:$0xff]
        %v300 = vld [vmem:[#allocation8 + $0xe0] sm:$0xff]
        %v301 = vld [vmem:[#allocation8 + $0xe8] sm:$0xff]
        %v302 = vld [vmem:[#allocation8 + $0xf0] sm:$0xff]
        %v303 = vld [vmem:[#allocation8 + $0xf8] sm:$0xff]
        %v304 = vld [vmem:[%s3] sm:$0xf]
        %v306 = vlaneseq
        %v307 = vshrl.u32 %v306, 7
        %v308 = vsub.s32 0, %v307
        %v309 = vrot.slane %v304, %v308
        %v310 = vlaneseq
        %v311 = vshrl.u32 %v310, 7
        %v312 = vsub.s32 1, %v311
        %v313 = vrot.slane %v304, %v312
        %v314 = vlaneseq
        %v315 = vshrl.u32 %v314, 7
        %v316 = vsub.s32 2, %v315
        %v317 = vrot.slane %v304, %v316
        %v318 = vlaneseq
        %v319 = vshrl.u32 %v318, 7
        %v320 = vsub.s32 3, %v319
        %v321 = vrot.slane %v304, %v320
        %v334 = vunpack.c.l.b16 %v264
        %v335 = vunpack.c.l.b16 %v265
        %v336 = vunpack.c.l.b16 %v266
        %v337 = vunpack.c.l.b16 %v267
        %v338 = vunpack.c.l.b16 %v268
        %v339 = vunpack.c.l.b16 %v269
        %v340 = vunpack.c.l.b16 %v270
        %v341 = vunpack.c.l.b16 %v271
        %v342 = vpack.c.b16 %v335, %v334
        %v343 = vpack.c.b16 %v337, %v336
        %v344 = vpack.c.b16 %v339, %v338
        %v345 = vpack.c.b16 %v341, %v340
        %v382 = vunpack.c.l.b16 %v272
        %v383 = vunpack.c.h.b16 %v272
        %v384 = vunpack.c.l.b16 %v273
        %v385 = vunpack.c.h.b16 %v273
        %v386 = vunpack.c.l.b16 %v274
        %v387 = vunpack.c.h.b16 %v274
        %v388 = vunpack.c.l.b16 %v275
        %v389 = vunpack.c.h.b16 %v275
        %v390 = vunpack.c.l.b16 %v276
        %v391 = vunpack.c.h.b16 %v276
        %v392 = vunpack.c.l.b16 %v277
        %v393 = vunpack.c.h.b16 %v277
        %v394 = vunpack.c.l.b16 %v278
        %v395 = vunpack.c.h.b16 %v278
        %v396 = vunpack.c.l.b16 %v279
        %v397 = vunpack.c.h.b16 %v279
        %v398 = vunpack.c.l.b16 %v280
        %v399 = vunpack.c.h.b16 %v280
        %v400 = vunpack.c.l.b16 %v281
        %v401 = vunpack.c.h.b16 %v281
        %v402 = vunpack.c.l.b16 %v282
        %v403 = vunpack.c.h.b16 %v282
        %v404 = vunpack.c.l.b16 %v283
        %v405 = vunpack.c.h.b16 %v283
        %v406 = vunpack.c.l.b16 %v284
        %v407 = vunpack.c.h.b16 %v284
        %v408 = vunpack.c.l.b16 %v285
        %v409 = vunpack.c.h.b16 %v285
        %v410 = vunpack.c.l.b16 %v286
        %v411 = vunpack.c.h.b16 %v286
        %v412 = vunpack.c.l.b16 %v287
        %v413 = vunpack.c.h.b16 %v287
        %v414 = vunpack.c.l.b16 %v288
        %v415 = vunpack.c.h.b16 %v288
        %v416 = vunpack.c.l.b16 %v289
        %v417 = vunpack.c.h.b16 %v289
        %v418 = vunpack.c.l.b16 %v290
        %v419 = vunpack.c.h.b16 %v290
        %v420 = vunpack.c.l.b16 %v291
        %v421 = vunpack.c.h.b16 %v291
        %v422 = vunpack.c.l.b16 %v292
        %v423 = vunpack.c.h.b16 %v292
        %v424 = vunpack.c.l.b16 %v293
        %v425 = vunpack.c.h.b16 %v293
        %v426 = vunpack.c.l.b16 %v294
        %v427 = vunpack.c.h.b16 %v294
        %v428 = vunpack.c.l.b16 %v295
        %v429 = vunpack.c.h.b16 %v295
        %v430 = vunpack.c.l.b16 %v296
        %v431 = vunpack.c.h.b16 %v296
        %v432 = vunpack.c.l.b16 %v297
        %v433 = vunpack.c.h.b16 %v297
        %v434 = vunpack.c.l.b16 %v298
        %v435 = vunpack.c.h.b16 %v298
        %v436 = vunpack.c.l.b16 %v299
        %v437 = vunpack.c.h.b16 %v299
        %v438 = vunpack.c.l.b16 %v300
        %v439 = vunpack.c.h.b16 %v300
        %v440 = vunpack.c.l.b16 %v301
        %v441 = vunpack.c.h.b16 %v301
        %v442 = vunpack.c.l.b16 %v302
        %v443 = vunpack.c.h.b16 %v302
        %v444 = vunpack.c.l.b16 %v303
        %v445 = vunpack.c.h.b16 %v303
        %v446 = vpack.c.b16 %v386, %v382
        %v447 = vpack.c.b16 %v387, %v383
        %v448 = vpack.c.b16 %v388, %v384
        %v449 = vpack.c.b16 %v389, %v385
        %v450 = vpack.c.b16 %v394, %v390
        %v451 = vpack.c.b16 %v395, %v391
        %v452 = vpack.c.b16 %v396, %v392
        %v453 = vpack.c.b16 %v397, %v393
        %v454 = vpack.c.b16 %v402, %v398
        %v455 = vpack.c.b16 %v403, %v399
        %v456 = vpack.c.b16 %v404, %v400
        %v457 = vpack.c.b16 %v405, %v401
        %v458 = vpack.c.b16 %v410, %v406
        %v459 = vpack.c.b16 %v411, %v407
        %v460 = vpack.c.b16 %v412, %v408
        %v461 = vpack.c.b16 %v413, %v409
        %v462 = vpack.c.b16 %v418, %v414
        %v463 = vpack.c.b16 %v419, %v415
        %v464 = vpack.c.b16 %v420, %v416
        %v465 = vpack.c.b16 %v421, %v417
        %v466 = vpack.c.b16 %v426, %v422
        %v467 = vpack.c.b16 %v427, %v423
        %v468 = vpack.c.b16 %v428, %v424
        %v469 = vpack.c.b16 %v429, %v425
        %v470 = vpack.c.b16 %v434, %v430
        %v471 = vpack.c.b16 %v435, %v431
        %v472 = vpack.c.b16 %v436, %v432
        %v473 = vpack.c.b16 %v437, %v433
        %v474 = vpack.c.b16 %v442, %v438
        %v475 = vpack.c.b16 %v443, %v439
        %v476 = vpack.c.b16 %v444, %v440
        %v477 = vpack.c.b16 %v445, %v441
        %510 = vmatprep.subr.bf16.mxu0 %v475
        %511 = vmatpush1.bf16.msra.mxu0 %v474
        %512 = vmatprep.subr.bf16.mxu0 %v471
        %513 = vmatpush1.bf16.msra.mxu0 %v470
        %514 = vmatprep.subr.bf16.mxu0 %v467
        %515 = vmatpush1.bf16.msra.mxu0 %v466
        %516 = vmatprep.subr.bf16.mxu0 %v463
        %517 = vmatpush1.bf16.msra.mxu0 %v462
        %518 = vmatprep.subr.bf16.mxu0 %v459
        %519 = vmatpush1.bf16.msra.mxu0 %v458
        %520 = vmatprep.subr.bf16.mxu0 %v455
        %521 = vmatpush1.bf16.msra.mxu0 %v454
        %522 = vmatprep.subr.bf16.mxu0 %v451
        %523 = vmatpush1.bf16.msra.mxu0 %v450
        %524 = vmatprep.subr.bf16.mxu0 %v447
        %525 = vmatpush1.bf16.msra.mxu0 %v446
        %526 = vmatprep.subr.bf16.mxu0 0
        %527 = vmatpush2.bf16.msra.mxu0 0
        %528 = vmatprep.subr.bf16.mxu0 0
        %529 = vmatpush2.bf16.msra.mxu0 0
        %530 = vmatprep.subr.bf16.mxu0 0
        %531 = vmatpush2.bf16.msra.mxu0 0
        %532 = vmatprep.subr.bf16.mxu0 0
        %533 = vmatpush2.bf16.msra.mxu0 0
        %534 = vmatprep.subr.bf16.mxu0 0
        %535 = vmatpush2.bf16.msra.mxu0 0
        %536 = vmatprep.subr.bf16.mxu0 0
        %537 = vmatpush2.bf16.msra.mxu0 0
        %538 = vmatprep.subr.bf16.mxu0 0
        %539 = vmatpush2.bf16.msra.mxu0 0
        %540 = vmatprep.subr.bf16.mxu0 0
        %541 = vmatpush2.bf16.msra.mxu0 0
        %542 = vmatprep.mubr.bf16.mxu0 0
        %543 = vmatmul.mubr.bf16.gmra.mxu0 %v342
        %v544 = vpop.f32.mrf.mxu0
        %v545 = vadd.f32 %v309, %v544
        %v546 = vpop.f32.mrf.mxu0
        %v547 = vadd.f32 %v313, %v546
        %v548 = vpop.f32.mrf.mxu0
        %v549 = vadd.f32 %v309, %v548
        %v550 = vpop.f32.mrf.mxu0
        %v551 = vadd.f32 %v313, %v550
        %552 = vmatprep.mubr.bf16.mxu0 0
        %553 = vmatmul.mubr.bf16.gmra.mxu0 %v343
        %v554 = vpop.f32.mrf.mxu0
        %v555 = vadd.f32 %v309, %v554
        %v556 = vpop.f32.mrf.mxu0
        %v557 = vadd.f32 %v313, %v556
        %v558 = vpop.f32.mrf.mxu0
        %v559 = vadd.f32 %v309, %v558
        %v560 = vpop.f32.mrf.mxu0
        %v561 = vadd.f32 %v313, %v560
        %562 = vmatprep.mubr.bf16.mxu0 0
        %563 = vmatmul.mubr.bf16.gmra.mxu0 %v344
        %v564 = vpop.f32.mrf.mxu0
        %v565 = vadd.f32 %v309, %v564
        %v566 = vpop.f32.mrf.mxu0
        %v567 = vadd.f32 %v313, %v566
        %v568 = vpop.f32.mrf.mxu0
        %v569 = vadd.f32 %v309, %v568
        %v570 = vpop.f32.mrf.mxu0
        %v571 = vadd.f32 %v313, %v570
        %572 = vmatprep.mubr.bf16.mxu0 0
        %573 = vmatmul.mubr.bf16.gmra.mxu0 %v345
        %v574 = vpop.f32.mrf.mxu0
        %v575 = vadd.f32 %v309, %v574
        %v576 = vpop.f32.mrf.mxu0
        %v577 = vadd.f32 %v313, %v576
        %v578 = vpop.f32.mrf.mxu0
        %v579 = vadd.f32 %v309, %v578
        %v580 = vpop.f32.mrf.mxu0
        %v581 = vadd.f32 %v313, %v580
        %582 = vdwg.mxu0
        %583 = vmatprep.subr.bf16.mxu0 %v477
        %584 = vmatpush1.bf16.msra.mxu0 %v476
        %585 = vmatprep.subr.bf16.mxu0 %v473
        %586 = vmatpush1.bf16.msra.mxu0 %v472
        %587 = vmatprep.subr.bf16.mxu0 %v469
        %588 = vmatpush1.bf16.msra.mxu0 %v468
        %589 = vmatprep.subr.bf16.mxu0 %v465
        %590 = vmatpush1.bf16.msra.mxu0 %v464
        %591 = vmatprep.subr.bf16.mxu0 %v461
        %592 = vmatpush1.bf16.msra.mxu0 %v460
        %593 = vmatprep.subr.bf16.mxu0 %v457
        %594 = vmatpush1.bf16.msra.mxu0 %v456
        %595 = vmatprep.subr.bf16.mxu0 %v453
        %596 = vmatpush1.bf16.msra.mxu0 %v452
        %597 = vmatprep.subr.bf16.mxu0 %v449
        %598 = vmatpush1.bf16.msra.mxu0 %v448
        %599 = vmatprep.subr.bf16.mxu0 0
        %600 = vmatpush2.bf16.msra.mxu0 0
        %601 = vmatprep.subr.bf16.mxu0 0
        %602 = vmatpush2.bf16.msra.mxu0 0
        %603 = vmatprep.subr.bf16.mxu0 0
        %604 = vmatpush2.bf16.msra.mxu0 0
        %605 = vmatprep.subr.bf16.mxu0 0
        %606 = vmatpush2.bf16.msra.mxu0 0
        %607 = vmatprep.subr.bf16.mxu0 0
        %608 = vmatpush2.bf16.msra.mxu0 0
        %609 = vmatprep.subr.bf16.mxu0 0
        %610 = vmatpush2.bf16.msra.mxu0 0
        %611 = vmatprep.subr.bf16.mxu0 0
        %612 = vmatpush2.bf16.msra.mxu0 0
        %613 = vmatprep.subr.bf16.mxu0 0
        %614 = vmatpush2.bf16.msra.mxu0 0
        %615 = vmatprep.mubr.bf16.mxu0 0
        %616 = vmatmul.mubr.bf16.gmra.mxu0 %v342
        %v617 = vpop.f32.mrf.mxu0
        %v618 = vadd.f32 %v317, %v617
        %v619 = vpop.f32.mrf.mxu0
        %v620 = vadd.f32 %v321, %v619
        %v621 = vpop.f32.mrf.mxu0
        %v622 = vadd.f32 %v317, %v621
        %v623 = vpop.f32.mrf.mxu0
        %v624 = vadd.f32 %v321, %v623
        %625 = vmatprep.mubr.bf16.mxu0 0
        %626 = vmatmul.mubr.bf16.gmra.mxu0 %v343
        %v627 = vpop.f32.mrf.mxu0
        %v628 = vadd.f32 %v317, %v627
        %v629 = vpop.f32.mrf.mxu0
        %v630 = vadd.f32 %v321, %v629
        %v631 = vpop.f32.mrf.mxu0
        %v632 = vadd.f32 %v317, %v631
        %v633 = vpop.f32.mrf.mxu0
        %v634 = vadd.f32 %v321, %v633
        %635 = vmatprep.mubr.bf16.mxu0 0
        %636 = vmatmul.mubr.bf16.gmra.mxu0 %v344
        %v637 = vpop.f32.mrf.mxu0
        %v638 = vadd.f32 %v317, %v637
        %v639 = vpop.f32.mrf.mxu0
        %v640 = vadd.f32 %v321, %v639
        %v641 = vpop.f32.mrf.mxu0
        %v642 = vadd.f32 %v317, %v641
        %v643 = vpop.f32.mrf.mxu0
        %v644 = vadd.f32 %v321, %v643
        %645 = vmatprep.mubr.bf16.mxu0 0
        %646 = vmatmul.mubr.bf16.gmra.mxu0 %v345
        %v647 = vpop.f32.mrf.mxu0
        %v648 = vadd.f32 %v317, %v647
        %v649 = vpop.f32.mrf.mxu0
        %v650 = vadd.f32 %v321, %v649
        %v651 = vpop.f32.mrf.mxu0
        %v652 = vadd.f32 %v317, %v651
        %v653 = vpop.f32.mrf.mxu0
        %v654 = vadd.f32 %v321, %v653
        %655 = vdwg.mxu0
        %656 = vst [vmem:[#allocation2] sm:$0xff] %v545
        %657 = vst [vmem:[#allocation2 + $0x8] sm:$0xff] %v547
        %658 = vst [vmem:[#allocation2 + $0x10] sm:$0xff] %v618
        %659 = vst [vmem:[#allocation2 + $0x18] sm:$0xff] %v620
        %660 = vst [vmem:[#allocation2 + $0x20] sm:$0xff] %v549
        %661 = vst [vmem:[#allocation2 + $0x28] sm:$0xff] %v551
        %662 = vst [vmem:[#allocation2 + $0x30] sm:$0xff] %v622
        %663 = vst [vmem:[#allocation2 + $0x38] sm:$0xff] %v624
        %664 = vst [vmem:[#allocation2 + $0x40] sm:$0xff] %v555
        %665 = vst [vmem:[#allocation2 + $0x48] sm:$0xff] %v557
        %666 = vst [vmem:[#allocation2 + $0x50] sm:$0xff] %v628
        %667 = vst [vmem:[#allocation2 + $0x58] sm:$0xff] %v630
        %668 = vst [vmem:[#allocation2 + $0x60] sm:$0xff] %v559
        %669 = vst [vmem:[#allocation2 + $0x68] sm:$0xff] %v561
        %670 = vst [vmem:[#allocation2 + $0x70] sm:$0xff] %v632
        %671 = vst [vmem:[#allocation2 + $0x78] sm:$0xff] %v634
        %672 = vst [vmem:[#allocation2 + $0x80] sm:$0xff] %v565
        %673 = vst [vmem:[#allocation2 + $0x88] sm:$0xff] %v567
        %674 = vst [vmem:[#allocation2 + $0x90] sm:$0xff] %v638
        %675 = vst [vmem:[#allocation2 + $0x98] sm:$0xff] %v640
        %676 = vst [vmem:[#allocation2 + $0xa0] sm:$0xff] %v569
        %677 = vst [vmem:[#allocation2 + $0xa8] sm:$0xff] %v571
        %678 = vst [vmem:[#allocation2 + $0xb0] sm:$0xff] %v642
        %679 = vst [vmem:[#allocation2 + $0xb8] sm:$0xff] %v644
        %680 = vst [vmem:[#allocation2 + $0xc0] sm:$0xff] %v575
        %681 = vst [vmem:[#allocation2 + $0xc8] sm:$0xff] %v577
        %682 = vst [vmem:[#allocation2 + $0xd0] sm:$0xff] %v648
        %683 = vst [vmem:[#allocation2 + $0xd8] sm:$0xff] %v650
        %684 = vst [vmem:[#allocation2 + $0xe0] sm:$0xff] %v579
        %685 = vst [vmem:[#allocation2 + $0xe8] sm:$0xff] %v581
        %686 = vst [vmem:[#allocation2 + $0xf0] sm:$0xff] %v652
        %687 = vst [vmem:[#allocation2 + $0xf8] sm:$0xff] %v654
        %s688 = smul.u32 %s25, 4
        %v689 = vld [vmem:[#allocation3] sm:$0xf]
        %v690 = vld [vmem:[#allocation3 + $0x4] sm:$0xf]
        %v691 = vld [vmem:[#allocation4] sm:$0xff]
        %v692 = vld [vmem:[#allocation4 + $0x8] sm:$0xff]
        %v693 = vld [vmem:[#allocation2] sm:$0xff]
        %v694 = vld [vmem:[#allocation2 + $0x8] sm:$0xff]
        %v695 = vld [vmem:[#allocation2 + $0x10] sm:$0xff]
        %v696 = vld [vmem:[#allocation2 + $0x18] sm:$0xff]
        %v697 = vld [vmem:[#allocation2 + $0x20] sm:$0xff]
        %v698 = vld [vmem:[#allocation2 + $0x28] sm:$0xff]
        %v699 = vld [vmem:[#allocation2 + $0x30] sm:$0xff]
        %v700 = vld [vmem:[#allocation2 + $0x38] sm:$0xff]
        %v701 = vld [vmem:[#allocation10] sm:$0xff]
        %v702 = vld [vmem:[#allocation10 + $0x8] sm:$0xff]
        %v703 = vld [vmem:[#allocation10 + $0x10] sm:$0xff]
        %v704 = vld [vmem:[#allocation10 + $0x18] sm:$0xff]
        %v705 = vld [vmem:[#allocation10 + $0x20] sm:$0xff]
        %v706 = vld [vmem:[#allocation10 + $0x28] sm:$0xff]
        %v707 = vld [vmem:[#allocation10 + $0x30] sm:$0xff]
        %v708 = vld [vmem:[#allocation10 + $0x38] sm:$0xff]
        %v709 = vld [vmem:[#allocation10 + $0x40] sm:$0xff]
        %v710 = vld [vmem:[#allocation10 + $0x48] sm:$0xff]
        %v711 = vld [vmem:[#allocation10 + $0x50] sm:$0xff]
        %v712 = vld [vmem:[#allocation10 + $0x58] sm:$0xff]
        %v713 = vld [vmem:[#allocation10 + $0x60] sm:$0xff]
        %v714 = vld [vmem:[#allocation10 + $0x68] sm:$0xff]
        %v715 = vld [vmem:[#allocation10 + $0x70] sm:$0xff]
        %v716 = vld [vmem:[#allocation10 + $0x78] sm:$0xff]
        %v717 = vld [vmem:[#allocation10 + $0x80] sm:$0xff]
        %v718 = vld [vmem:[#allocation10 + $0x88] sm:$0xff]
        %v719 = vld [vmem:[#allocation10 + $0x90] sm:$0xff]
        %v720 = vld [vmem:[#allocation10 + $0x98] sm:$0xff]
        %v721 = vld [vmem:[#allocation10 + $0xa0] sm:$0xff]
        %v722 = vld [vmem:[#allocation10 + $0xa8] sm:$0xff]
        %v723 = vld [vmem:[#allocation10 + $0xb0] sm:$0xff]
        %v724 = vld [vmem:[#allocation10 + $0xb8] sm:$0xff]
        %v725 = vld [vmem:[#allocation10 + $0xc0] sm:$0xff]
        %v726 = vld [vmem:[#allocation10 + $0xc8] sm:$0xff]
        %v727 = vld [vmem:[#allocation10 + $0xd0] sm:$0xff]
        %v728 = vld [vmem:[#allocation10 + $0xd8] sm:$0xff]
        %v729 = vld [vmem:[#allocation10 + $0xe0] sm:$0xff]
        %v730 = vld [vmem:[#allocation10 + $0xe8] sm:$0xff]
        %v731 = vld [vmem:[#allocation10 + $0xf0] sm:$0xff]
        %v732 = vld [vmem:[#allocation10 + $0xf8] sm:$0xff]
        %v735 = vunpack.c.l.b16 %v689
        %v736 = vunpack.c.l.b16 %v690
        %v737 = vpack.c.b16 %v736, %v735
        %v771 = vunpack.c.l.b16 %v701
        %v772 = vunpack.c.h.b16 %v701
        %v773 = vunpack.c.l.b16 %v702
        %v774 = vunpack.c.h.b16 %v702
        %v775 = vunpack.c.l.b16 %v703
        %v776 = vunpack.c.h.b16 %v703
        %v777 = vunpack.c.l.b16 %v704
        %v778 = vunpack.c.h.b16 %v704
        %v779 = vunpack.c.l.b16 %v705
        %v780 = vunpack.c.h.b16 %v705
        %v781 = vunpack.c.l.b16 %v706
        %v782 = vunpack.c.h.b16 %v706
        %v783 = vunpack.c.l.b16 %v707
        %v784 = vunpack.c.h.b16 %v707
        %v785 = vunpack.c.l.b16 %v708
        %v786 = vunpack.c.h.b16 %v708
        %v787 = vunpack.c.l.b16 %v709
        %v788 = vunpack.c.h.b16 %v709
        %v789 = vunpack.c.l.b16 %v710
        %v790 = vunpack.c.h.b16 %v710
        %v791 = vunpack.c.l.b16 %v711
        %v792 = vunpack.c.h.b16 %v711
        %v793 = vunpack.c.l.b16 %v712
        %v794 = vunpack.c.h.b16 %v712
        %v795 = vunpack.c.l.b16 %v713
        %v796 = vunpack.c.h.b16 %v713
        %v797 = vunpack.c.l.b16 %v714
        %v798 = vunpack.c.h.b16 %v714
        %v799 = vunpack.c.l.b16 %v715
        %v800 = vunpack.c.h.b16 %v715
        %v801 = vunpack.c.l.b16 %v716
        %v802 = vunpack.c.h.b16 %v716
        %v803 = vunpack.c.l.b16 %v717
        %v804 = vunpack.c.h.b16 %v717
        %v805 = vunpack.c.l.b16 %v718
        %v806 = vunpack.c.h.b16 %v718
        %v807 = vunpack.c.l.b16 %v719
        %v808 = vunpack.c.h.b16 %v719
        %v809 = vunpack.c.l.b16 %v720
        %v810 = vunpack.c.h.b16 %v720
        %v811 = vunpack.c.l.b16 %v721
        %v812 = vunpack.c.h.b16 %v721
        %v813 = vunpack.c.l.b16 %v722
        %v814 = vunpack.c.h.b16 %v722
        %v815 = vunpack.c.l.b16 %v723
        %v816 = vunpack.c.h.b16 %v723
        %v817 = vunpack.c.l.b16 %v724
        %v818 = vunpack.c.h.b16 %v724
        %v819 = vunpack.c.l.b16 %v725
        %v820 = vunpack.c.h.b16 %v725
        %v821 = vunpack.c.l.b16 %v726
        %v822 = vunpack.c.h.b16 %v726
        %v823 = vunpack.c.l.b16 %v727
        %v824 = vunpack.c.h.b16 %v727
        %v825 = vunpack.c.l.b16 %v728
        %v826 = vunpack.c.h.b16 %v728
        %v827 = vunpack.c.l.b16 %v729
        %v828 = vunpack.c.h.b16 %v729
        %v829 = vunpack.c.l.b16 %v730
        %v830 = vunpack.c.h.b16 %v730
        %v831 = vunpack.c.l.b16 %v731
        %v832 = vunpack.c.h.b16 %v731
        %v833 = vunpack.c.l.b16 %v732
        %v834 = vunpack.c.h.b16 %v732
        %v835 = vpack.c.b16 %v775, %v771
        %v836 = vpack.c.b16 %v776, %v772
        %v837 = vpack.c.b16 %v777, %v773
        %v838 = vpack.c.b16 %v778, %v774
        %v839 = vpack.c.b16 %v783, %v779
        %v840 = vpack.c.b16 %v784, %v780
        %v841 = vpack.c.b16 %v785, %v781
        %v842 = vpack.c.b16 %v786, %v782
        %v843 = vpack.c.b16 %v791, %v787
        %v844 = vpack.c.b16 %v792, %v788
        %v845 = vpack.c.b16 %v793, %v789
        %v846 = vpack.c.b16 %v794, %v790
        %v847 = vpack.c.b16 %v799, %v795
        %v848 = vpack.c.b16 %v800, %v796
        %v849 = vpack.c.b16 %v801, %v797
        %v850 = vpack.c.b16 %v802, %v798
        %v851 = vpack.c.b16 %v807, %v803
        %v852 = vpack.c.b16 %v808, %v804
        %v853 = vpack.c.b16 %v809, %v805
        %v854 = vpack.c.b16 %v810, %v806
        %v855 = vpack.c.b16 %v815, %v811
        %v856 = vpack.c.b16 %v816, %v812
        %v857 = vpack.c.b16 %v817, %v813
        %v858 = vpack.c.b16 %v818, %v814
        %v859 = vpack.c.b16 %v823, %v819
        %v860 = vpack.c.b16 %v824, %v820
        %v861 = vpack.c.b16 %v825, %v821
        %v862 = vpack.c.b16 %v826, %v822
        %v863 = vpack.c.b16 %v831, %v827
        %v864 = vpack.c.b16 %v832, %v828
        %v865 = vpack.c.b16 %v833, %v829
        %v866 = vpack.c.b16 %v834, %v830
        %899 = vmatprep.subr.bf16.mxu0 %v864
        %900 = vmatpush1.bf16.msra.mxu0 %v863
        %901 = vmatprep.subr.bf16.mxu0 %v860
        %902 = vmatpush1.bf16.msra.mxu0 %v859
        %903 = vmatprep.subr.bf16.mxu0 %v856
        %904 = vmatpush1.bf16.msra.mxu0 %v855
        %905 = vmatprep.subr.bf16.mxu0 %v852
        %906 = vmatpush1.bf16.msra.mxu0 %v851
        %907 = vmatprep.subr.bf16.mxu0 %v848
        %908 = vmatpush1.bf16.msra.mxu0 %v847
        %909 = vmatprep.subr.bf16.mxu0 %v844
        %910 = vmatpush1.bf16.msra.mxu0 %v843
        %911 = vmatprep.subr.bf16.mxu0 %v840
        %912 = vmatpush1.bf16.msra.mxu0 %v839
        %913 = vmatprep.subr.bf16.mxu0 %v836
        %914 = vmatpush1.bf16.msra.mxu0 %v835
        %915 = vmatprep.subr.bf16.mxu0 0
        %916 = vmatpush2.bf16.msra.mxu0 0
        %917 = vmatprep.subr.bf16.mxu0 0
        %918 = vmatpush2.bf16.msra.mxu0 0
        %919 = vmatprep.subr.bf16.mxu0 0
        %920 = vmatpush2.bf16.msra.mxu0 0
        %921 = vmatprep.subr.bf16.mxu0 0
        %922 = vmatpush2.bf16.msra.mxu0 0
        %923 = vmatprep.subr.bf16.mxu0 0
        %924 = vmatpush2.bf16.msra.mxu0 0
        %925 = vmatprep.subr.bf16.mxu0 0
        %926 = vmatpush2.bf16.msra.mxu0 0
        %927 = vmatprep.subr.bf16.mxu0 0
        %928 = vmatpush2.bf16.msra.mxu0 0
        %929 = vmatprep.subr.bf16.mxu0 0
        %930 = vmatpush2.bf16.msra.mxu0 0
        %931 = vmatprep.mubr.bf16.mxu0 0
        %932 = vmatmul.mubr.bf16.gmra.mxu0 %v737
        %v933 = vpop.f32.mrf.mxu0
        %v934 = vadd.f32 0.0, %v933
        %v935 = vpop.f32.mrf.mxu0
        %v936 = vadd.f32 0.0, %v935
        %v937 = vpop.f32.mrf.mxu0
        %v938 = vadd.f32 0.0, %v937
        %v939 = vpop.f32.mrf.mxu0
        %v940 = vadd.f32 0.0, %v939
        %941 = vdwg.mxu0
        %942 = vmatprep.subr.bf16.mxu0 %v866
        %943 = vmatpush1.bf16.msra.mxu0 %v865
        %944 = vmatprep.subr.bf16.mxu0 %v862
        %945 = vmatpush1.bf16.msra.mxu0 %v861
        %946 = vmatprep.subr.bf16.mxu0 %v858
        %947 = vmatpush1.bf16.msra.mxu0 %v857
        %948 = vmatprep.subr.bf16.mxu0 %v854
        %949 = vmatpush1.bf16.msra.mxu0 %v853
        %950 = vmatprep.subr.bf16.mxu0 %v850
        %951 = vmatpush1.bf16.msra.mxu0 %v849
        %952 = vmatprep.subr.bf16.mxu0 %v846
        %953 = vmatpush1.bf16.msra.mxu0 %v845
        %954 = vmatprep.subr.bf16.mxu0 %v842
        %955 = vmatpush1.bf16.msra.mxu0 %v841
        %956 = vmatprep.subr.bf16.mxu0 %v838
        %957 = vmatpush1.bf16.msra.mxu0 %v837
        %958 = vmatprep.subr.bf16.mxu0 0
        %959 = vmatpush2.bf16.msra.mxu0 0
        %960 = vmatprep.subr.bf16.mxu0 0
        %961 = vmatpush2.bf16.msra.mxu0 0
        %962 = vmatprep.subr.bf16.mxu0 0
        %963 = vmatpush2.bf16.msra.mxu0 0
        %964 = vmatprep.subr.bf16.mxu0 0
        %965 = vmatpush2.bf16.msra.mxu0 0
        %966 = vmatprep.subr.bf16.mxu0 0
        %967 = vmatpush2.bf16.msra.mxu0 0
        %968 = vmatprep.subr.bf16.mxu0 0
        %969 = vmatpush2.bf16.msra.mxu0 0
        %970 = vmatprep.subr.bf16.mxu0 0
        %971 = vmatpush2.bf16.msra.mxu0 0
        %972 = vmatprep.subr.bf16.mxu0 0
        %973 = vmatpush2.bf16.msra.mxu0 0
        %974 = vmatprep.mubr.bf16.mxu0 0
        %975 = vmatmul.mubr.bf16.gmra.mxu0 %v737
        %v976 = vpop.f32.mrf.mxu0
        %v977 = vadd.f32 0.0, %v976
        %v978 = vpop.f32.mrf.mxu0
        %v979 = vadd.f32 0.0, %v978
        %v980 = vpop.f32.mrf.mxu0
        %v981 = vadd.f32 0.0, %v980
        %v982 = vpop.f32.mrf.mxu0
        %v983 = vadd.f32 0.0, %v982
        %984 = vdwg.mxu0
        %v985 = vadd.f32 %v693, %v934
        %v986 = vadd.f32 %v694, %v936
        %v987 = vadd.f32 %v695, %v977
        %v988 = vadd.f32 %v696, %v979
        %v989 = vadd.f32 %v697, %v938
        %v990 = vadd.f32 %v698, %v940
        %v991 = vadd.f32 %v699, %v981
        %v992 = vadd.f32 %v700, %v983
        %v993 = vxor.u32 %v985, 2147483648
        %v994 = vxor.u32 %v989, 2147483648
        %v995 = vmul.f32 %v993, 1.442695
        %v996 = vpow.pop %v995
        %v997 = vmul.f32 %v994, 1.442695
        %v998 = vpow.pop %v997
        %v999 = vadd.f32 %v996, 1.0
        %v1000 = vadd.f32 %v998, 1.0
        %v1001 = vrcp.pop %v999
        %v1002 = vmul.f32 1.0, %v1001
        %v1003 = vrcp.pop %v1000
        %v1004 = vmul.f32 1.0, %v1003
        %v1005 = vxor.u32 %v986, 2147483648
        %v1006 = vxor.u32 %v990, 2147483648
        %v1007 = vmul.f32 %v1005, 1.442695
        %v1008 = vpow.pop %v1007
        %v1009 = vmul.f32 %v1006, 1.442695
        %v1010 = vpow.pop %v1009
        %v1011 = vadd.f32 %v1008, 1.0
        %v1012 = vadd.f32 %v1010, 1.0
        %v1013 = vrcp.pop %v1011
        %v1014 = vmul.f32 1.0, %v1013
        %v1015 = vrcp.pop %v1012
        %v1016 = vmul.f32 1.0, %v1015
        %v1017 = vtanh.pop %v987
        %v1018 = vtanh.pop %v991
        %v1019 = vxor.u32 %v988, 2147483648
        %v1020 = vxor.u32 %v992, 2147483648
        %v1021 = vmul.f32 %v1019, 1.442695
        %v1022 = vpow.pop %v1021
        %v1023 = vmul.f32 %v1020, 1.442695
        %v1024 = vpow.pop %v1023
        %v1025 = vadd.f32 %v1022, 1.0
        %v1026 = vadd.f32 %v1024, 1.0
        %v1027 = vrcp.pop %v1025
        %v1028 = vmul.f32 1.0, %v1027
        %v1029 = vrcp.pop %v1026
        %v1030 = vmul.f32 1.0, %v1029
        %v1031 = vmul.f32 %v1014, %v691
        %v1032 = vmul.f32 %v1016, %v692
        %v1033 = vmul.f32 %v1002, %v1017
        %v1034 = vmul.f32 %v1004, %v1018
        %v1035 = vadd.f32 %v1031, %v1033
        %v1036 = vadd.f32 %v1032, %v1034
        %v1037 = vtanh.pop %v1035
        %v1038 = vtanh.pop %v1036
        %v1039 = vmul.f32 %v1028, %v1037
        %v1040 = vmul.f32 %v1030, %v1038
        %p1041 = scmp.eq.s32.totalorder %s688, 9
        // Predicated region
        $region53: #{tpu_custom_call.1} parent=35 // pred_check
          %p1042 = pneg %p1041
        $region54: #{tpu_custom_call.1} parent=35 // pred_check_branch
          %1044 = sbr.rel (%p1042) target = $region56
        $region55: #{tpu_custom_call.1} parent=35 // pred_region
          %1045 = vst [vmem:[#allocation11] sm:$0xff] %v1039
          %1046 = vst [vmem:[#allocation11 + $0x8] sm:$0xff] %v1040
        $region56: #{tpu_custom_call.1} parent=35 // pred_fallthru
          _
        %v1047 = vpack.c.bf16 %v1040, %v1039
        %v1048 = vld [vmem:[#allocation2 + $0x40] sm:$0xff]
        %v1049 = vld [vmem:[#allocation2 + $0x48] sm:$0xff]
        %v1050 = vld [vmem:[#allocation2 + $0x50] sm:$0xff]
        %v1051 = vld [vmem:[#allocation2 + $0x58] sm:$0xff]
        %v1052 = vld [vmem:[#allocation2 + $0x60] sm:$0xff]
        %v1053 = vld [vmem:[#allocation2 + $0x68] sm:$0xff]
        %v1054 = vld [vmem:[#allocation2 + $0x70] sm:$0xff]
        %v1055 = vld [vmem:[#allocation2 + $0x78] sm:$0xff]
        %v1056 = vld [vmem:[#allocation10] sm:$0xff]
        %v1057 = vld [vmem:[#allocation10 + $0x8] sm:$0xff]
        %v1058 = vld [vmem:[#allocation10 + $0x10] sm:$0xff]
        %v1059 = vld [vmem:[#allocation10 + $0x18] sm:$0xff]
        %v1060 = vld [vmem:[#allocation10 + $0x20] sm:$0xff]
        %v1061 = vld [vmem:[#allocation10 + $0x28] sm:$0xff]
        %v1062 = vld [vmem:[#allocation10 + $0x30] sm:$0xff]
        %v1063 = vld [vmem:[#allocation10 + $0x38] sm:$0xff]
        %v1064 = vld [vmem:[#allocation10 + $0x40] sm:$0xff]
        %v1065 = vld [vmem:[#allocation10 + $0x48] sm:$0xff]
        %v1066 = vld [vmem:[#allocation10 + $0x50] sm:$0xff]
        %v1067 = vld [vmem:[#allocation10 + $0x58] sm:$0xff]
        %v1068 = vld [vmem:[#allocation10 + $0x60] sm:$0xff]
        %v1069 = vld [vmem:[#allocation10 + $0x68] sm:$0xff]
        %v1070 = vld [vmem:[#allocation10 + $0x70] sm:$0xff]
        %v1071 = vld [vmem:[#allocation10 + $0x78] sm:$0xff]
        %v1072 = vld [vmem:[#allocation10 + $0x80] sm:$0xff]
        %v1073 = vld [vmem:[#allocation10 + $0x88] sm:$0xff]
        %v1074 = vld [vmem:[#allocation10 + $0x90] sm:$0xff]
        %v1075 = vld [vmem:[#allocation10 + $0x98] sm:$0xff]
        %v1076 = vld [vmem:[#allocation10 + $0xa0] sm:$0xff]
        %v1077 = vld [vmem:[#allocation10 + $0xa8] sm:$0xff]
        %v1078 = vld [vmem:[#allocation10 + $0xb0] sm:$0xff]
        %v1079 = vld [vmem:[#allocation10 + $0xb8] sm:$0xff]
        %v1080 = vld [vmem:[#allocation10 + $0xc0] sm:$0xff]
        %v1081 = vld [vmem:[#allocation10 + $0xc8] sm:$0xff]
        %v1082 = vld [vmem:[#allocation10 + $0xd0] sm:$0xff]
        %v1083 = vld [vmem:[#allocation10 + $0xd8] sm:$0xff]
        %v1084 = vld [vmem:[#allocation10 + $0xe0] sm:$0xff]
        %v1085 = vld [vmem:[#allocation10 + $0xe8] sm:$0xff]
        %v1086 = vld [vmem:[#allocation10 + $0xf0] sm:$0xff]
        %v1087 = vld [vmem:[#allocation10 + $0xf8] sm:$0xff]
        %v1120 = vunpack.c.l.b16 %v1056
        %v1121 = vunpack.c.h.b16 %v1056
        %v1122 = vunpack.c.l.b16 %v1057
        %v1123 = vunpack.c.h.b16 %v1057
        %v1124 = vunpack.c.l.b16 %v1058
        %v1125 = vunpack.c.h.b16 %v1058
        %v1126 = vunpack.c.l.b16 %v1059
        %v1127 = vunpack.c.h.b16 %v1059
        %v1128 = vunpack.c.l.b16 %v1060
        %v1129 = vunpack.c.h.b16 %v1060
        %v1130 = vunpack.c.l.b16 %v1061
        %v1131 = vunpack.c.h.b16 %v1061
        %v1132 = vunpack.c.l.b16 %v1062
        %v1133 = vunpack.c.h.b16 %v1062
        %v1134 = vunpack.c.l.b16 %v1063
        %v1135 = vunpack.c.h.b16 %v1063
        %v1136 = vunpack.c.l.b16 %v1064
        %v1137 = vunpack.c.h.b16 %v1064
        %v1138 = vunpack.c.l.b16 %v1065
        %v1139 = vunpack.c.h.b16 %v1065
        %v1140 = vunpack.c.l.b16 %v1066
        %v1141 = vunpack.c.h.b16 %v1066
        %v1142 = vunpack.c.l.b16 %v1067
        %v1143 = vunpack.c.h.b16 %v1067
        %v1144 = vunpack.c.l.b16 %v1068
        %v1145 = vunpack.c.h.b16 %v1068
        %v1146 = vunpack.c.l.b16 %v1069
        %v1147 = vunpack.c.h.b16 %v1069
        %v1148 = vunpack.c.l.b16 %v1070
        %v1149 = vunpack.c.h.b16 %v1070
        %v1150 = vunpack.c.l.b16 %v1071
        %v1151 = vunpack.c.h.b16 %v1071
        %v1152 = vunpack.c.l.b16 %v1072
        %v1153 = vunpack.c.h.b16 %v1072
        %v1154 = vunpack.c.l.b16 %v1073
        %v1155 = vunpack.c.h.b16 %v1073
        %v1156 = vunpack.c.l.b16 %v1074
        %v1157 = vunpack.c.h.b16 %v1074
        %v1158 = vunpack.c.l.b16 %v1075
        %v1159 = vunpack.c.h.b16 %v1075
        %v1160 = vunpack.c.l.b16 %v1076
        %v1161 = vunpack.c.h.b16 %v1076
        %v1162 = vunpack.c.l.b16 %v1077
        %v1163 = vunpack.c.h.b16 %v1077
        %v1164 = vunpack.c.l.b16 %v1078
        %v1165 = vunpack.c.h.b16 %v1078
        %v1166 = vunpack.c.l.b16 %v1079
        %v1167 = vunpack.c.h.b16 %v1079
        %v1168 = vunpack.c.l.b16 %v1080
        %v1169 = vunpack.c.h.b16 %v1080
        %v1170 = vunpack.c.l.b16 %v1081
        %v1171 = vunpack.c.h.b16 %v1081
        %v1172 = vunpack.c.l.b16 %v1082
        %v1173 = vunpack.c.h.b16 %v1082
        %v1174 = vunpack.c.l.b16 %v1083
        %v1175 = vunpack.c.h.b16 %v1083
        %v1176 = vunpack.c.l.b16 %v1084
        %v1177 = vunpack.c.h.b16 %v1084
        %v1178 = vunpack.c.l.b16 %v1085
        %v1179 = vunpack.c.h.b16 %v1085
        %v1180 = vunpack.c.l.b16 %v1086
        %v1181 = vunpack.c.h.b16 %v1086
        %v1182 = vunpack.c.l.b16 %v1087
        %v1183 = vunpack.c.h.b16 %v1087
        %v1184 = vpack.c.b16 %v1124, %v1120
        %v1185 = vpack.c.b16 %v1125, %v1121
        %v1186 = vpack.c.b16 %v1126, %v1122
        %v1187 = vpack.c.b16 %v1127, %v1123
        %v1188 = vpack.c.b16 %v1132, %v1128
        %v1189 = vpack.c.b16 %v1133, %v1129
        %v1190 = vpack.c.b16 %v1134, %v1130
        %v1191 = vpack.c.b16 %v1135, %v1131
        %v1192 = vpack.c.b16 %v1140, %v1136
        %v1193 = vpack.c.b16 %v1141, %v1137
        %v1194 = vpack.c.b16 %v1142, %v1138
        %v1195 = vpack.c.b16 %v1143, %v1139
        %v1196 = vpack.c.b16 %v1148, %v1144
        %v1197 = vpack.c.b16 %v1149, %v1145
        %v1198 = vpack.c.b16 %v1150, %v1146
        %v1199 = vpack.c.b16 %v1151, %v1147
        %v1200 = vpack.c.b16 %v1156, %v1152
        %v1201 = vpack.c.b16 %v1157, %v1153
        %v1202 = vpack.c.b16 %v1158, %v1154
        %v1203 = vpack.c.b16 %v1159, %v1155
        %v1204 = vpack.c.b16 %v1164, %v1160
        %v1205 = vpack.c.b16 %v1165, %v1161
        %v1206 = vpack.c.b16 %v1166, %v1162
        %v1207 = vpack.c.b16 %v1167, %v1163
        %v1208 = vpack.c.b16 %v1172, %v1168
        %v1209 = vpack.c.b16 %v1173, %v1169
        %v1210 = vpack.c.b16 %v1174, %v1170
        %v1211 = vpack.c.b16 %v1175, %v1171
        %v1212 = vpack.c.b16 %v1180, %v1176
        %v1213 = vpack.c.b16 %v1181, %v1177
        %v1214 = vpack.c.b16 %v1182, %v1178
        %v1215 = vpack.c.b16 %v1183, %v1179
        %1248 = vmatprep.subr.bf16.mxu0 %v1213
        %1249 = vmatpush1.bf16.msra.mxu0 %v1212
        %1250 = vmatprep.subr.bf16.mxu0 %v1209
        %1251 = vmatpush1.bf16.msra.mxu0 %v1208
        %1252 = vmatprep.subr.bf16.mxu0 %v1205
        %1253 = vmatpush1.bf16.msra.mxu0 %v1204
        %1254 = vmatprep.subr.bf16.mxu0 %v1201
        %1255 = vmatpush1.bf16.msra.mxu0 %v1200
        %1256 = vmatprep.subr.bf16.mxu0 %v1197
        %1257 = vmatpush1.bf16.msra.mxu0 %v1196
        %1258 = vmatprep.subr.bf16.mxu0 %v1193
        %1259 = vmatpush1.bf16.msra.mxu0 %v1192
        %1260 = vmatprep.subr.bf16.mxu0 %v1189
        %1261 = vmatpush1.bf16.msra.mxu0 %v1188
        %1262 = vmatprep.subr.bf16.mxu0 %v1185
        %1263 = vmatpush1.bf16.msra.mxu0 %v1184
        %1264 = vmatprep.subr.bf16.mxu0 0
        %1265 = vmatpush2.bf16.msra.mxu0 0
        %1266 = vmatprep.subr.bf16.mxu0 0
        %1267 = vmatpush2.bf16.msra.mxu0 0
        %1268 = vmatprep.subr.bf16.mxu0 0
        %1269 = vmatpush2.bf16.msra.mxu0 0
        %1270 = vmatprep.subr.bf16.mxu0 0
        %1271 = vmatpush2.bf16.msra.mxu0 0
        %1272 = vmatprep.subr.bf16.mxu0 0
        %1273 = vmatpush2.bf16.msra.mxu0 0
        %1274 = vmatprep.subr.bf16.mxu0 0
        %1275 = vmatpush2.bf16.msra.mxu0 0
        %1276 = vmatprep.subr.bf16.mxu0 0
        %1277 = vmatpush2.bf16.msra.mxu0 0
        %1278 = vmatprep.subr.bf16.mxu0 0
        %1279 = vmatpush2.bf16.msra.mxu0 0
        %1280 = vmatprep.mubr.bf16.mxu0 0
        %1281 = vmatmul.mubr.bf16.gmra.mxu0 %v1047
        %v1282 = vpop.f32.mrf.mxu0
        %v1283 = vadd.f32 0.0, %v1282
        %v1284 = vpop.f32.mrf.mxu0
        %v1285 = vadd.f32 0.0, %v1284
        %v1286 = vpop.f32.mrf.mxu0
        %v1287 = vadd.f32 0.0, %v1286
        %v1288 = vpop.f32.mrf.mxu0
        %v1289 = vadd.f32 0.0, %v1288
        %1290 = vdwg.mxu0
        %1291 = vmatprep.subr.bf16.mxu0 %v1215
        %1292 = vmatpush1.bf16.msra.mxu0 %v1214
        %1293 = vmatprep.subr.bf16.mxu0 %v1211
        %1294 = vmatpush1.bf16.msra.mxu0 %v1210
        %1295 = vmatprep.subr.bf16.mxu0 %v1207
        %1296 = vmatpush1.bf16.msra.mxu0 %v1206
        %1297 = vmatprep.subr.bf16.mxu0 %v1203
        %1298 = vmatpush1.bf16.msra.mxu0 %v1202
        %1299 = vmatprep.subr.bf16.mxu0 %v1199
        %1300 = vmatpush1.bf16.msra.mxu0 %v1198
        %1301 = vmatprep.subr.bf16.mxu0 %v1195
        %1302 = vmatpush1.bf16.msra.mxu0 %v1194
        %1303 = vmatprep.subr.bf16.mxu0 %v1191
        %1304 = vmatpush1.bf16.msra.mxu0 %v1190
        %1305 = vmatprep.subr.bf16.mxu0 %v1187
        %1306 = vmatpush1.bf16.msra.mxu0 %v1186
        %1307 = vmatprep.subr.bf16.mxu0 0
        %1308 = vmatpush2.bf16.msra.mxu0 0
        %1309 = vmatprep.subr.bf16.mxu0 0
        %1310 = vmatpush2.bf16.msra.mxu0 0
        %1311 = vmatprep.subr.bf16.mxu0 0
        %1312 = vmatpush2.bf16.msra.mxu0 0
        %1313 = vmatprep.subr.bf16.mxu0 0
        %1314 = vmatpush2.bf16.msra.mxu0 0
        %1315 = vmatprep.subr.bf16.mxu0 0
        %1316 = vmatpush2.bf16.msra.mxu0 0
        %1317 = vmatprep.subr.bf16.mxu0 0
        %1318 = vmatpush2.bf16.msra.mxu0 0
        %1319 = vmatprep.subr.bf16.mxu0 0
        %1320 = vmatpush2.bf16.msra.mxu0 0
        %1321 = vmatprep.subr.bf16.mxu0 0
        %1322 = vmatpush2.bf16.msra.mxu0 0
        %1323 = vmatprep.mubr.bf16.mxu0 0
        %1324 = vmatmul.mubr.bf16.gmra.mxu0 %v1047
        %v1325 = vpop.f32.mrf.mxu0
        %v1326 = vadd.f32 0.0, %v1325
        %v1327 = vpop.f32.mrf.mxu0
        %v1328 = vadd.f32 0.0, %v1327
        %v1329 = vpop.f32.mrf.mxu0
        %v1330 = vadd.f32 0.0, %v1329
        %v1331 = vpop.f32.mrf.mxu0
        %v1332 = vadd.f32 0.0, %v1331
        %1333 = vdwg.mxu0
        %v1334 = vadd.f32 %v1048, %v1283
        %v1335 = vadd.f32 %v1049, %v1285
        %v1336 = vadd.f32 %v1050, %v1326
        %v1337 = vadd.f32 %v1051, %v1328
        %v1338 = vadd.f32 %v1052, %v1287
        %v1339 = vadd.f32 %v1053, %v1289
        %v1340 = vadd.f32 %v1054, %v1330
        %v1341 = vadd.f32 %v1055, %v1332
        %v1342 = vxor.u32 %v1334, 2147483648
        %v1343 = vxor.u32 %v1338, 2147483648
        %v1344 = vmul.f32 %v1342, 1.442695
        %v1345 = vpow.pop %v1344
        %v1346 = vmul.f32 %v1343, 1.442695
        %v1347 = vpow.pop %v1346
        %v1348 = vadd.f32 %v1345, 1.0
        %v1349 = vadd.f32 %v1347, 1.0
        %v1350 = vrcp.pop %v1348
        %v1351 = vmul.f32 1.0, %v1350
        %v1352 = vrcp.pop %v1349
        %v1353 = vmul.f32 1.0, %v1352
        %v1354 = vxor.u32 %v1335, 2147483648
        %v1355 = vxor.u32 %v1339, 2147483648
        %v1356 = vmul.f32 %v1354, 1.442695
        %v1357 = vpow.pop %v1356
        %v1358 = vmul.f32 %v1355, 1.442695
        %v1359 = vpow.pop %v1358
        %v1360 = vadd.f32 %v1357, 1.0
        %v1361 = vadd.f32 %v1359, 1.0
        %v1362 = vrcp.pop %v1360
        %v1363 = vmul.f32 1.0, %v1362
        %v1364 = vrcp.pop %v1361
        %v1365 = vmul.f32 1.0, %v1364
        %v1366 = vtanh.pop %v1336
        %v1367 = vtanh.pop %v1340
        %v1368 = vxor.u32 %v1337, 2147483648
        %v1369 = vxor.u32 %v1341, 2147483648
        %v1370 = vmul.f32 %v1368, 1.442695
        %v1371 = vpow.pop %v1370
        %v1372 = vmul.f32 %v1369, 1.442695
        %v1373 = vpow.pop %v1372
        %v1374 = vadd.f32 %v1371, 1.0
        %v1375 = vadd.f32 %v1373, 1.0
        %v1376 = vrcp.pop %v1374
        %v1377 = vmul.f32 1.0, %v1376
        %v1378 = vrcp.pop %v1375
        %v1379 = vmul.f32 1.0, %v1378
        %v1380 = vmul.f32 %v1363, %v1035
        %v1381 = vmul.f32 %v1365, %v1036
        %v1382 = vmul.f32 %v1351, %v1366
        %v1383 = vmul.f32 %v1353, %v1367
        %v1384 = vadd.f32 %v1380, %v1382
        %v1385 = vadd.f32 %v1381, %v1383
        %v1386 = vtanh.pop %v1384
        %v1387 = vtanh.pop %v1385
        %v1388 = vmul.f32 %v1377, %v1386
        %v1389 = vmul.f32 %v1379, %v1387
        %s1390 = sadd.s32 %s688, 1
        %p1391 = scmp.eq.s32.totalorder %s1390, 9
        // Predicated region
        $region57: #{tpu_custom_call.1} parent=35 // pred_check
          %p1392 = pneg %p1391
        $region58: #{tpu_custom_call.1} parent=35 // pred_check_branch
          %1394 = sbr.rel (%p1392) target = $region60
        $region59: #{tpu_custom_call.1} parent=35 // pred_region
          %1395 = vst [vmem:[#allocation11] sm:$0xff] %v1388
          %1396 = vst [vmem:[#allocation11 + $0x8] sm:$0xff] %v1389
        $region60: #{tpu_custom_call.1} parent=35 // pred_fallthru
          _
        %v1397 = vpack.c.bf16 %v1389, %v1388
        %v1398 = vld [vmem:[#allocation2 + $0x80] sm:$0xff]
        %v1399 = vld [vmem:[#allocation2 + $0x88] sm:$0xff]
        %v1400 = vld [vmem:[#allocation2 + $0x90] sm:$0xff]
        %v1401 = vld [vmem:[#allocation2 + $0x98] sm:$0xff]
        %v1402 = vld [vmem:[#allocation2 + $0xa0] sm:$0xff]
        %v1403 = vld [vmem:[#allocation2 + $0xa8] sm:$0xff]
        %v1404 = vld [vmem:[#allocation2 + $0xb0] sm:$0xff]
        %v1405 = vld [vmem:[#allocation2 + $0xb8] sm:$0xff]
        %v1406 = vld [vmem:[#allocation10] sm:$0xff]
        %v1407 = vld [vmem:[#allocation10 + $0x8] sm:$0xff]
        %v1408 = vld [vmem:[#allocation10 + $0x10] sm:$0xff]
        %v1409 = vld [vmem:[#allocation10 + $0x18] sm:$0xff]
        %v1410 = vld [vmem:[#allocation10 + $0x20] sm:$0xff]
        %v1411 = vld [vmem:[#allocation10 + $0x28] sm:$0xff]
        %v1412 = vld [vmem:[#allocation10 + $0x30] sm:$0xff]
        %v1413 = vld [vmem:[#allocation10 + $0x38] sm:$0xff]
        %v1414 = vld [vmem:[#allocation10 + $0x40] sm:$0xff]
        %v1415 = vld [vmem:[#allocation10 + $0x48] sm:$0xff]
        %v1416 = vld [vmem:[#allocation10 + $0x50] sm:$0xff]
        %v1417 = vld [vmem:[#allocation10 + $0x58] sm:$0xff]
        %v1418 = vld [vmem:[#allocation10 + $0x60] sm:$0xff]
        %v1419 = vld [vmem:[#allocation10 + $0x68] sm:$0xff]
        %v1420 = vld [vmem:[#allocation10 + $0x70] sm:$0xff]
        %v1421 = vld [vmem:[#allocation10 + $0x78] sm:$0xff]
        %v1422 = vld [vmem:[#allocation10 + $0x80] sm:$0xff]
        %v1423 = vld [vmem:[#allocation10 + $0x88] sm:$0xff]
        %v1424 = vld [vmem:[#allocation10 + $0x90] sm:$0xff]
        %v1425 = vld [vmem:[#allocation10 + $0x98] sm:$0xff]
        %v1426 = vld [vmem:[#allocation10 + $0xa0] sm:$0xff]
        %v1427 = vld [vmem:[#allocation10 + $0xa8] sm:$0xff]
        %v1428 = vld [vmem:[#allocation10 + $0xb0] sm:$0xff]
        %v1429 = vld [vmem:[#allocation10 + $0xb8] sm:$0xff]
        %v1430 = vld [vmem:[#allocation10 + $0xc0] sm:$0xff]
        %v1431 = vld [vmem:[#allocation10 + $0xc8] sm:$0xff]
        %v1432 = vld [vmem:[#allocation10 + $0xd0] sm:$0xff]
        %v1433 = vld [vmem:[#allocation10 + $0xd8] sm:$0xff]
        %v1434 = vld [vmem:[#allocation10 + $0xe0] sm:$0xff]
        %v1435 = vld [vmem:[#allocation10 + $0xe8] sm:$0xff]
        %v1436 = vld [vmem:[#allocation10 + $0xf0] sm:$0xff]
        %v1437 = vld [vmem:[#allocation10 + $0xf8] sm:$0xff]
        %v1470 = vunpack.c.l.b16 %v1406
        %v1471 = vunpack.c.h.b16 %v1406
        %v1472 = vunpack.c.l.b16 %v1407
        %v1473 = vunpack.c.h.b16 %v1407
        %v1474 = vunpack.c.l.b16 %v1408
        %v1475 = vunpack.c.h.b16 %v1408
        %v1476 = vunpack.c.l.b16 %v1409
        %v1477 = vunpack.c.h.b16 %v1409
        %v1478 = vunpack.c.l.b16 %v1410
        %v1479 = vunpack.c.h.b16 %v1410
        %v1480 = vunpack.c.l.b16 %v1411
        %v1481 = vunpack.c.h.b16 %v1411
        %v1482 = vunpack.c.l.b16 %v1412
        %v1483 = vunpack.c.h.b16 %v1412
        %v1484 = vunpack.c.l.b16 %v1413
        %v1485 = vunpack.c.h.b16 %v1413
        %v1486 = vunpack.c.l.b16 %v1414
        %v1487 = vunpack.c.h.b16 %v1414
        %v1488 = vunpack.c.l.b16 %v1415
        %v1489 = vunpack.c.h.b16 %v1415
        %v1490 = vunpack.c.l.b16 %v1416
        %v1491 = vunpack.c.h.b16 %v1416
        %v1492 = vunpack.c.l.b16 %v1417
        %v1493 = vunpack.c.h.b16 %v1417
        %v1494 = vunpack.c.l.b16 %v1418
        %v1495 = vunpack.c.h.b16 %v1418
        %v1496 = vunpack.c.l.b16 %v1419
        %v1497 = vunpack.c.h.b16 %v1419
        %v1498 = vunpack.c.l.b16 %v1420
        %v1499 = vunpack.c.h.b16 %v1420
        %v1500 = vunpack.c.l.b16 %v1421
        %v1501 = vunpack.c.h.b16 %v1421
        %v1502 = vunpack.c.l.b16 %v1422
        %v1503 = vunpack.c.h.b16 %v1422
        %v1504 = vunpack.c.l.b16 %v1423
        %v1505 = vunpack.c.h.b16 %v1423
        %v1506 = vunpack.c.l.b16 %v1424
        %v1507 = vunpack.c.h.b16 %v1424
        %v1508 = vunpack.c.l.b16 %v1425
        %v1509 = vunpack.c.h.b16 %v1425
        %v1510 = vunpack.c.l.b16 %v1426
        %v1511 = vunpack.c.h.b16 %v1426
        %v1512 = vunpack.c.l.b16 %v1427
        %v1513 = vunpack.c.h.b16 %v1427
        %v1514 = vunpack.c.l.b16 %v1428
        %v1515 = vunpack.c.h.b16 %v1428
        %v1516 = vunpack.c.l.b16 %v1429
        %v1517 = vunpack.c.h.b16 %v1429
        %v1518 = vunpack.c.l.b16 %v1430
        %v1519 = vunpack.c.h.b16 %v1430
        %v1520 = vunpack.c.l.b16 %v1431
        %v1521 = vunpack.c.h.b16 %v1431
        %v1522 = vunpack.c.l.b16 %v1432
        %v1523 = vunpack.c.h.b16 %v1432
        %v1524 = vunpack.c.l.b16 %v1433
        %v1525 = vunpack.c.h.b16 %v1433
        %v1526 = vunpack.c.l.b16 %v1434
        %v1527 = vunpack.c.h.b16 %v1434
        %v1528 = vunpack.c.l.b16 %v1435
        %v1529 = vunpack.c.h.b16 %v1435
        %v1530 = vunpack.c.l.b16 %v1436
        %v1531 = vunpack.c.h.b16 %v1436
        %v1532 = vunpack.c.l.b16 %v1437
        %v1533 = vunpack.c.h.b16 %v1437
        %v1534 = vpack.c.b16 %v1474, %v1470
        %v1535 = vpack.c.b16 %v1475, %v1471
        %v1536 = vpack.c.b16 %v1476, %v1472
        %v1537 = vpack.c.b16 %v1477, %v1473
        %v1538 = vpack.c.b16 %v1482, %v1478
        %v1539 = vpack.c.b16 %v1483, %v1479
        %v1540 = vpack.c.b16 %v1484, %v1480
        %v1541 = vpack.c.b16 %v1485, %v1481
        %v1542 = vpack.c.b16 %v1490, %v1486
        %v1543 = vpack.c.b16 %v1491, %v1487
        %v1544 = vpack.c.b16 %v1492, %v1488
        %v1545 = vpack.c.b16 %v1493, %v1489
        %v1546 = vpack.c.b16 %v1498, %v1494
        %v1547 = vpack.c.b16 %v1499, %v1495
        %v1548 = vpack.c.b16 %v1500, %v1496
        %v1549 = vpack.c.b16 %v1501, %v1497
        %v1550 = vpack.c.b16 %v1506, %v1502
        %v1551 = vpack.c.b16 %v1507, %v1503
        %v1552 = vpack.c.b16 %v1508, %v1504
        %v1553 = vpack.c.b16 %v1509, %v1505
        %v1554 = vpack.c.b16 %v1514, %v1510
        %v1555 = vpack.c.b16 %v1515, %v1511
        %v1556 = vpack.c.b16 %v1516, %v1512
        %v1557 = vpack.c.b16 %v1517, %v1513
        %v1558 = vpack.c.b16 %v1522, %v1518
        %v1559 = vpack.c.b16 %v1523, %v1519
        %v1560 = vpack.c.b16 %v1524, %v1520
        %v1561 = vpack.c.b16 %v1525, %v1521
        %v1562 = vpack.c.b16 %v1530, %v1526
        %v1563 = vpack.c.b16 %v1531, %v1527
        %v1564 = vpack.c.b16 %v1532, %v1528
        %v1565 = vpack.c.b16 %v1533, %v1529
        %1598 = vmatprep.subr.bf16.mxu0 %v1563
        %1599 = vmatpush1.bf16.msra.mxu0 %v1562
        %1600 = vmatprep.subr.bf16.mxu0 %v1559
        %1601 = vmatpush1.bf16.msra.mxu0 %v1558
        %1602 = vmatprep.subr.bf16.mxu0 %v1555
        %1603 = vmatpush1.bf16.msra.mxu0 %v1554
        %1604 = vmatprep.subr.bf16.mxu0 %v1551
        %1605 = vmatpush1.bf16.msra.mxu0 %v1550
        %1606 = vmatprep.subr.bf16.mxu0 %v1547
        %1607 = vmatpush1.bf16.msra.mxu0 %v1546
        %1608 = vmatprep.subr.bf16.mxu0 %v1543
        %1609 = vmatpush1.bf16.msra.mxu0 %v1542
        %1610 = vmatprep.subr.bf16.mxu0 %v1539
        %1611 = vmatpush1.bf16.msra.mxu0 %v1538
        %1612 = vmatprep.subr.bf16.mxu0 %v1535
        %1613 = vmatpush1.bf16.msra.mxu0 %v1534
        %1614 = vmatprep.subr.bf16.mxu0 0
        %1615 = vmatpush2.bf16.msra.mxu0 0
        %1616 = vmatprep.subr.bf16.mxu0 0
        %1617 = vmatpush2.bf16.msra.mxu0 0
        %1618 = vmatprep.subr.bf16.mxu0 0
        %1619 = vmatpush2.bf16.msra.mxu0 0
        %1620 = vmatprep.subr.bf16.mxu0 0
        %1621 = vmatpush2.bf16.msra.mxu0 0
        %1622 = vmatprep.subr.bf16.mxu0 0
        %1623 = vmatpush2.bf16.msra.mxu0 0
        %1624 = vmatprep.subr.bf16.mxu0 0
        %1625 = vmatpush2.bf16.msra.mxu0 0
        %1626 = vmatprep.subr.bf16.mxu0 0
        %1627 = vmatpush2.bf16.msra.mxu0 0
        %1628 = vmatprep.subr.bf16.mxu0 0
        %1629 = vmatpush2.bf16.msra.mxu0 0
        %1630 = vmatprep.mubr.bf16.mxu0 0
        %1631 = vmatmul.mubr.bf16.gmra.mxu0 %v1397
        %v1632 = vpop.f32.mrf.mxu0
        %v1633 = vadd.f32 0.0, %v1632
        %v1634 = vpop.f32.mrf.mxu0
        %v1635 = vadd.f32 0.0, %v1634
        %v1636 = vpop.f32.mrf.mxu0
        %v1637 = vadd.f32 0.0, %v1636
        %v1638 = vpop.f32.mrf.mxu0
        %v1639 = vadd.f32 0.0, %v1638
        %1640 = vdwg.mxu0
        %1641 = vmatprep.subr.bf16.mxu0 %v1565
        %1642 = vmatpush1.bf16.msra.mxu0 %v1564
        %1643 = vmatprep.subr.bf16.mxu0 %v1561
        %1644 = vmatpush1.bf16.msra.mxu0 %v1560
        %1645 = vmatprep.subr.bf16.mxu0 %v1557
        %1646 = vmatpush1.bf16.msra.mxu0 %v1556
        %1647 = vmatprep.subr.bf16.mxu0 %v1553
        %1648 = vmatpush1.bf16.msra.mxu0 %v1552
        %1649 = vmatprep.subr.bf16.mxu0 %v1549
        %1650 = vmatpush1.bf16.msra.mxu0 %v1548
        %1651 = vmatprep.subr.bf16.mxu0 %v1545
        %1652 = vmatpush1.bf16.msra.mxu0 %v1544
        %1653 = vmatprep.subr.bf16.mxu0 %v1541
        %1654 = vmatpush1.bf16.msra.mxu0 %v1540
        %1655 = vmatprep.subr.bf16.mxu0 %v1537
        %1656 = vmatpush1.bf16.msra.mxu0 %v1536
        %1657 = vmatprep.subr.bf16.mxu0 0
        %1658 = vmatpush2.bf16.msra.mxu0 0
        %1659 = vmatprep.subr.bf16.mxu0 0
        %1660 = vmatpush2.bf16.msra.mxu0 0
        %1661 = vmatprep.subr.bf16.mxu0 0
        %1662 = vmatpush2.bf16.msra.mxu0 0
        %1663 = vmatprep.subr.bf16.mxu0 0
        %1664 = vmatpush2.bf16.msra.mxu0 0
        %1665 = vmatprep.subr.bf16.mxu0 0
        %1666 = vmatpush2.bf16.msra.mxu0 0
        %1667 = vmatprep.subr.bf16.mxu0 0
        %1668 = vmatpush2.bf16.msra.mxu0 0
        %1669 = vmatprep.subr.bf16.mxu0 0
        %1670 = vmatpush2.bf16.msra.mxu0 0
        %1671 = vmatprep.subr.bf16.mxu0 0
        %1672 = vmatpush2.bf16.msra.mxu0 0
        %1673 = vmatprep.mubr.bf16.mxu0 0
        %1674 = vmatmul.mubr.bf16.gmra.mxu0 %v1397
        %v1675 = vpop.f32.mrf.mxu0
        %v1676 = vadd.f32 0.0, %v1675
        %v1677 = vpop.f32.mrf.mxu0
        %v1678 = vadd.f32 0.0, %v1677
        %v1679 = vpop.f32.mrf.mxu0
        %v1680 = vadd.f32 0.0, %v1679
        %v1681 = vpop.f32.mrf.mxu0
        %v1682 = vadd.f32 0.0, %v1681
        %1683 = vdwg.mxu0
        %v1684 = vadd.f32 %v1398, %v1633
        %v1685 = vadd.f32 %v1399, %v1635
        %v1686 = vadd.f32 %v1400, %v1676
        %v1687 = vadd.f32 %v1401, %v1678
        %v1688 = vadd.f32 %v1402, %v1637
        %v1689 = vadd.f32 %v1403, %v1639
        %v1690 = vadd.f32 %v1404, %v1680
        %v1691 = vadd.f32 %v1405, %v1682
        %v1692 = vxor.u32 %v1684, 2147483648
        %v1693 = vxor.u32 %v1688, 2147483648
        %v1694 = vmul.f32 %v1692, 1.442695
        %v1695 = vpow.pop %v1694
        %v1696 = vmul.f32 %v1693, 1.442695
        %v1697 = vpow.pop %v1696
        %v1698 = vadd.f32 %v1695, 1.0
        %v1699 = vadd.f32 %v1697, 1.0
        %v1700 = vrcp.pop %v1698
        %v1701 = vmul.f32 1.0, %v1700
        %v1702 = vrcp.pop %v1699
        %v1703 = vmul.f32 1.0, %v1702
        %v1704 = vxor.u32 %v1685, 2147483648
        %v1705 = vxor.u32 %v1689, 2147483648
        %v1706 = vmul.f32 %v1704, 1.442695
        %v1707 = vpow.pop %v1706
        %v1708 = vmul.f32 %v1705, 1.442695
        %v1709 = vpow.pop %v1708
        %v1710 = vadd.f32 %v1707, 1.0
        %v1711 = vadd.f32 %v1709, 1.0
        %v1712 = vrcp.pop %v1710
        %v1713 = vmul.f32 1.0, %v1712
        %v1714 = vrcp.pop %v1711
        %v1715 = vmul.f32 1.0, %v1714
        %v1716 = vtanh.pop %v1686
        %v1717 = vtanh.pop %v1690
        %v1718 = vxor.u32 %v1687, 2147483648
        %v1719 = vxor.u32 %v1691, 2147483648
        %v1720 = vmul.f32 %v1718, 1.442695
        %v1721 = vpow.pop %v1720
        %v1722 = vmul.f32 %v1719, 1.442695
        %v1723 = vpow.pop %v1722
        %v1724 = vadd.f32 %v1721, 1.0
        %v1725 = vadd.f32 %v1723, 1.0
        %v1726 = vrcp.pop %v1724
        %v1727 = vmul.f32 1.0, %v1726
        %v1728 = vrcp.pop %v1725
        %v1729 = vmul.f32 1.0, %v1728
        %v1730 = vmul.f32 %v1713, %v1384
        %v1731 = vmul.f32 %v1715, %v1385
        %v1732 = vmul.f32 %v1701, %v1716
        %v1733 = vmul.f32 %v1703, %v1717
        %v1734 = vadd.f32 %v1730, %v1732
        %v1735 = vadd.f32 %v1731, %v1733
        %v1736 = vtanh.pop %v1734
        %v1737 = vtanh.pop %v1735
        %v1738 = vmul.f32 %v1727, %v1736
        %v1739 = vmul.f32 %v1729, %v1737
        %s1740 = sadd.s32 %s688, 2
        %p1741 = scmp.eq.s32.totalorder %s1740, 9
        // Predicated region
        $region61: #{tpu_custom_call.1} parent=35 // pred_check
          %p1742 = pneg %p1741
        $region62: #{tpu_custom_call.1} parent=35 // pred_check_branch
          %1744 = sbr.rel (%p1742) target = $region64
        $region63: #{tpu_custom_call.1} parent=35 // pred_region
          %1745 = vst [vmem:[#allocation11] sm:$0xff] %v1738
          %1746 = vst [vmem:[#allocation11 + $0x8] sm:$0xff] %v1739
        $region64: #{tpu_custom_call.1} parent=35 // pred_fallthru
          _
        %v1747 = vpack.c.bf16 %v1739, %v1738
        %v1748 = vld [vmem:[#allocation2 + $0xc0] sm:$0xff]
        %v1749 = vld [vmem:[#allocation2 + $0xc8] sm:$0xff]
        %v1750 = vld [vmem:[#allocation2 + $0xd0] sm:$0xff]
        %v1751 = vld [vmem:[#allocation2 + $0xd8] sm:$0xff]
        %v1752 = vld [vmem:[#allocation2 + $0xe0] sm:$0xff]
        %v1753 = vld [vmem:[#allocation2 + $0xe8] sm:$0xff]
        %v1754 = vld [vmem:[#allocation2 + $0xf0] sm:$0xff]
        %v1755 = vld [vmem:[#allocation2 + $0xf8] sm:$0xff]
        %v1756 = vld [vmem:[#allocation10] sm:$0xff]
        %v1757 = vld [vmem:[#allocation10 + $0x8] sm:$0xff]
        %v1758 = vld [vmem:[#allocation10 + $0x10] sm:$0xff]
        %v1759 = vld [vmem:[#allocation10 + $0x18] sm:$0xff]
        %v1760 = vld [vmem:[#allocation10 + $0x20] sm:$0xff]
        %v1761 = vld [vmem:[#allocation10 + $0x28] sm:$0xff]
        %v1762 = vld [vmem:[#allocation10 + $0x30] sm:$0xff]
        %v1763 = vld [vmem:[#allocation10 + $0x38] sm:$0xff]
        %v1764 = vld [vmem:[#allocation10 + $0x40] sm:$0xff]
        %v1765 = vld [vmem:[#allocation10 + $0x48] sm:$0xff]
        %v1766 = vld [vmem:[#allocation10 + $0x50] sm:$0xff]
        %v1767 = vld [vmem:[#allocation10 + $0x58] sm:$0xff]
        %v1768 = vld [vmem:[#allocation10 + $0x60] sm:$0xff]
        %v1769 = vld [vmem:[#allocation10 + $0x68] sm:$0xff]
        %v1770 = vld [vmem:[#allocation10 + $0x70] sm:$0xff]
        %v1771 = vld [vmem:[#allocation10 + $0x78] sm:$0xff]
        %v1772 = vld [vmem:[#allocation10 + $0x80] sm:$0xff]
        %v1773 = vld [vmem:[#allocation10 + $0x88] sm:$0xff]
        %v1774 = vld [vmem:[#allocation10 + $0x90] sm:$0xff]
        %v1775 = vld [vmem:[#allocation10 + $0x98] sm:$0xff]
        %v1776 = vld [vmem:[#allocation10 + $0xa0] sm:$0xff]
        %v1777 = vld [vmem:[#allocation10 + $0xa8] sm:$0xff]
        %v1778 = vld [vmem:[#allocation10 + $0xb0] sm:$0xff]
        %v1779 = vld [vmem:[#allocation10 + $0xb8] sm:$0xff]
        %v1780 = vld [vmem:[#allocation10 + $0xc0] sm:$0xff]
        %v1781 = vld [vmem:[#allocation10 + $0xc8] sm:$0xff]
        %v1782 = vld [vmem:[#allocation10 + $0xd0] sm:$0xff]
        %v1783 = vld [vmem:[#allocation10 + $0xd8] sm:$0xff]
        %v1784 = vld [vmem:[#allocation10 + $0xe0] sm:$0xff]
        %v1785 = vld [vmem:[#allocation10 + $0xe8] sm:$0xff]
        %v1786 = vld [vmem:[#allocation10 + $0xf0] sm:$0xff]
        %v1787 = vld [vmem:[#allocation10 + $0xf8] sm:$0xff]
        %v1820 = vunpack.c.l.b16 %v1756
        %v1821 = vunpack.c.h.b16 %v1756
        %v1822 = vunpack.c.l.b16 %v1757
        %v1823 = vunpack.c.h.b16 %v1757
        %v1824 = vunpack.c.l.b16 %v1758
        %v1825 = vunpack.c.h.b16 %v1758
        %v1826 = vunpack.c.l.b16 %v1759
        %v1827 = vunpack.c.h.b16 %v1759
        %v1828 = vunpack.c.l.b16 %v1760
        %v1829 = vunpack.c.h.b16 %v1760
        %v1830 = vunpack.c.l.b16 %v1761
        %v1831 = vunpack.c.h.b16 %v1761
        %v1832 = vunpack.c.l.b16 %v1762
        %v1833 = vunpack.c.h.b16 %v1762
        %v1834 = vunpack.c.l.b16 %v1763
        %v1835 = vunpack.c.h.b16 %v1763
        %v1836 = vunpack.c.l.b16 %v1764
        %v1837 = vunpack.c.h.b16 %v1764
        %v1838 = vunpack.c.l.b16 %v1765
        %v1839 = vunpack.c.h.b16 %v1765
        %v1840 = vunpack.c.l.b16 %v1766
        %v1841 = vunpack.c.h.b16 %v1766
        %v1842 = vunpack.c.l.b16 %v1767
        %v1843 = vunpack.c.h.b16 %v1767
        %v1844 = vunpack.c.l.b16 %v1768
        %v1845 = vunpack.c.h.b16 %v1768
        %v1846 = vunpack.c.l.b16 %v1769
        %v1847 = vunpack.c.h.b16 %v1769
        %v1848 = vunpack.c.l.b16 %v1770
        %v1849 = vunpack.c.h.b16 %v1770
        %v1850 = vunpack.c.l.b16 %v1771
        %v1851 = vunpack.c.h.b16 %v1771
        %v1852 = vunpack.c.l.b16 %v1772
        %v1853 = vunpack.c.h.b16 %v1772
        %v1854 = vunpack.c.l.b16 %v1773
        %v1855 = vunpack.c.h.b16 %v1773
        %v1856 = vunpack.c.l.b16 %v1774
        %v1857 = vunpack.c.h.b16 %v1774
        %v1858 = vunpack.c.l.b16 %v1775
        %v1859 = vunpack.c.h.b16 %v1775
        %v1860 = vunpack.c.l.b16 %v1776
        %v1861 = vunpack.c.h.b16 %v1776
        %v1862 = vunpack.c.l.b16 %v1777
        %v1863 = vunpack.c.h.b16 %v1777
        %v1864 = vunpack.c.l.b16 %v1778
        %v1865 = vunpack.c.h.b16 %v1778
        %v1866 = vunpack.c.l.b16 %v1779
        %v1867 = vunpack.c.h.b16 %v1779
        %v1868 = vunpack.c.l.b16 %v1780
        %v1869 = vunpack.c.h.b16 %v1780
        %v1870 = vunpack.c.l.b16 %v1781
        %v1871 = vunpack.c.h.b16 %v1781
        %v1872 = vunpack.c.l.b16 %v1782
        %v1873 = vunpack.c.h.b16 %v1782
        %v1874 = vunpack.c.l.b16 %v1783
        %v1875 = vunpack.c.h.b16 %v1783
        %v1876 = vunpack.c.l.b16 %v1784
        %v1877 = vunpack.c.h.b16 %v1784
        %v1878 = vunpack.c.l.b16 %v1785
        %v1879 = vunpack.c.h.b16 %v1785
        %v1880 = vunpack.c.l.b16 %v1786
        %v1881 = vunpack.c.h.b16 %v1786
        %v1882 = vunpack.c.l.b16 %v1787
        %v1883 = vunpack.c.h.b16 %v1787
        %v1884 = vpack.c.b16 %v1824, %v1820
        %v1885 = vpack.c.b16 %v1825, %v1821
        %v1886 = vpack.c.b16 %v1826, %v1822
        %v1887 = vpack.c.b16 %v1827, %v1823
        %v1888 = vpack.c.b16 %v1832, %v1828
        %v1889 = vpack.c.b16 %v1833, %v1829
        %v1890 = vpack.c.b16 %v1834, %v1830
        %v1891 = vpack.c.b16 %v1835, %v1831
        %v1892 = vpack.c.b16 %v1840, %v1836
        %v1893 = vpack.c.b16 %v1841, %v1837
        %v1894 = vpack.c.b16 %v1842, %v1838
        %v1895 = vpack.c.b16 %v1843, %v1839
        %v1896 = vpack.c.b16 %v1848, %v1844
        %v1897 = vpack.c.b16 %v1849, %v1845
        %v1898 = vpack.c.b16 %v1850, %v1846
        %v1899 = vpack.c.b16 %v1851, %v1847
        %v1900 = vpack.c.b16 %v1856, %v1852
        %v1901 = vpack.c.b16 %v1857, %v1853
        %v1902 = vpack.c.b16 %v1858, %v1854
        %v1903 = vpack.c.b16 %v1859, %v1855
        %v1904 = vpack.c.b16 %v1864, %v1860
        %v1905 = vpack.c.b16 %v1865, %v1861
        %v1906 = vpack.c.b16 %v1866, %v1862
        %v1907 = vpack.c.b16 %v1867, %v1863
        %v1908 = vpack.c.b16 %v1872, %v1868
        %v1909 = vpack.c.b16 %v1873, %v1869
        %v1910 = vpack.c.b16 %v1874, %v1870
        %v1911 = vpack.c.b16 %v1875, %v1871
        %v1912 = vpack.c.b16 %v1880, %v1876
        %v1913 = vpack.c.b16 %v1881, %v1877
        %v1914 = vpack.c.b16 %v1882, %v1878
        %v1915 = vpack.c.b16 %v1883, %v1879
        %1948 = vmatprep.subr.bf16.mxu0 %v1913
        %1949 = vmatpush1.bf16.msra.mxu0 %v1912
        %1950 = vmatprep.subr.bf16.mxu0 %v1909
        %1951 = vmatpush1.bf16.msra.mxu0 %v1908
        %1952 = vmatprep.subr.bf16.mxu0 %v1905
        %1953 = vmatpush1.bf16.msra.mxu0 %v1904
        %1954 = vmatprep.subr.bf16.mxu0 %v1901
        %1955 = vmatpush1.bf16.msra.mxu0 %v1900
        %1956 = vmatprep.subr.bf16.mxu0 %v1897
        %1957 = vmatpush1.bf16.msra.mxu0 %v1896
        %1958 = vmatprep.subr.bf16.mxu0 %v1893
        %1959 = vmatpush1.bf16.msra.mxu0 %v1892
        %1960 = vmatprep.subr.bf16.mxu0 %v1889
        %1961 = vmatpush1.bf16.msra.mxu0 %v1888
        %1962 = vmatprep.subr.bf16.mxu0 %v1885
        %1963 = vmatpush1.bf16.msra.mxu0 %v1884
        %1964 = vmatprep.subr.bf16.mxu0 0
        %1965 = vmatpush2.bf16.msra.mxu0 0
        %1966 = vmatprep.subr.bf16.mxu0 0
        %1967 = vmatpush2.bf16.msra.mxu0 0
        %1968 = vmatprep.subr.bf16.mxu0 0
        %1969 = vmatpush2.bf16.msra.mxu0 0
        %1970 = vmatprep.subr.bf16.mxu0 0
        %1971 = vmatpush2.bf16.msra.mxu0 0
        %1972 = vmatprep.subr.bf16.mxu0 0
        %1973 = vmatpush2.bf16.msra.mxu0 0
        %1974 = vmatprep.subr.bf16.mxu0 0
        %1975 = vmatpush2.bf16.msra.mxu0 0
        %1976 = vmatprep.subr.bf16.mxu0 0
        %1977 = vmatpush2.bf16.msra.mxu0 0
        %1978 = vmatprep.subr.bf16.mxu0 0
        %1979 = vmatpush2.bf16.msra.mxu0 0
        %1980 = vmatprep.mubr.bf16.mxu0 0
        %1981 = vmatmul.mubr.bf16.gmra.mxu0 %v1747
        %v1982 = vpop.f32.mrf.mxu0
        %v1983 = vadd.f32 0.0, %v1982
        %v1984 = vpop.f32.mrf.mxu0
        %v1985 = vadd.f32 0.0, %v1984
        %v1986 = vpop.f32.mrf.mxu0
        %v1987 = vadd.f32 0.0, %v1986
        %v1988 = vpop.f32.mrf.mxu0
        %v1989 = vadd.f32 0.0, %v1988
        %1990 = vdwg.mxu0
        %1991 = vmatprep.subr.bf16.mxu0 %v1915
        %1992 = vmatpush1.bf16.msra.mxu0 %v1914
        %1993 = vmatprep.subr.bf16.mxu0 %v1911
        %1994 = vmatpush1.bf16.msra.mxu0 %v1910
        %1995 = vmatprep.subr.bf16.mxu0 %v1907
        %1996 = vmatpush1.bf16.msra.mxu0 %v1906
        %1997 = vmatprep.subr.bf16.mxu0 %v1903
        %1998 = vmatpush1.bf16.msra.mxu0 %v1902
        %1999 = vmatprep.subr.bf16.mxu0 %v1899
        %2000 = vmatpush1.bf16.msra.mxu0 %v1898
        %2001 = vmatprep.subr.bf16.mxu0 %v1895
        %2002 = vmatpush1.bf16.msra.mxu0 %v1894
        %2003 = vmatprep.subr.bf16.mxu0 %v1891
        %2004 = vmatpush1.bf16.msra.mxu0 %v1890
        %2005 = vmatprep.subr.bf16.mxu0 %v1887
        %2006 = vmatpush1.bf16.msra.mxu0 %v1886
        %2007 = vmatprep.subr.bf16.mxu0 0
        %2008 = vmatpush2.bf16.msra.mxu0 0
        %2009 = vmatprep.subr.bf16.mxu0 0
        %2010 = vmatpush2.bf16.msra.mxu0 0
        %2011 = vmatprep.subr.bf16.mxu0 0
        %2012 = vmatpush2.bf16.msra.mxu0 0
        %2013 = vmatprep.subr.bf16.mxu0 0
        %2014 = vmatpush2.bf16.msra.mxu0 0
        %2015 = vmatprep.subr.bf16.mxu0 0
        %2016 = vmatpush2.bf16.msra.mxu0 0
        %2017 = vmatprep.subr.bf16.mxu0 0
        %2018 = vmatpush2.bf16.msra.mxu0 0
        %2019 = vmatprep.subr.bf16.mxu0 0
        %2020 = vmatpush2.bf16.msra.mxu0 0
        %2021 = vmatprep.subr.bf16.mxu0 0
        %2022 = vmatpush2.bf16.msra.mxu0 0
        %2023 = vmatprep.mubr.bf16.mxu0 0
        %2024 = vmatmul.mubr.bf16.gmra.mxu0 %v1747
        %v2025 = vpop.f32.mrf.mxu0
        %v2026 = vadd.f32 0.0, %v2025
        %v2027 = vpop.f32.mrf.mxu0
        %v2028 = vadd.f32 0.0, %v2027
        %v2029 = vpop.f32.mrf.mxu0
        %v2030 = vadd.f32 0.0, %v2029
        %v2031 = vpop.f32.mrf.mxu0
        %v2032 = vadd.f32 0.0, %v2031
        %2033 = vdwg.mxu0
        %v2034 = vadd.f32 %v1748, %v1983
        %v2035 = vadd.f32 %v1749, %v1985
        %v2036 = vadd.f32 %v1750, %v2026
        %v2037 = vadd.f32 %v1751, %v2028
        %v2038 = vadd.f32 %v1752, %v1987
        %v2039 = vadd.f32 %v1753, %v1989
        %v2040 = vadd.f32 %v1754, %v2030
        %v2041 = vadd.f32 %v1755, %v2032
        %v2042 = vxor.u32 %v2034, 2147483648
        %v2043 = vxor.u32 %v2038, 2147483648
        %v2044 = vmul.f32 %v2042, 1.442695
        %v2045 = vpow.pop %v2044
        %v2046 = vmul.f32 %v2043, 1.442695
        %v2047 = vpow.pop %v2046
        %v2048 = vadd.f32 %v2045, 1.0
        %v2049 = vadd.f32 %v2047, 1.0
        %v2050 = vrcp.pop %v2048
        %v2051 = vmul.f32 1.0, %v2050
        %v2052 = vrcp.pop %v2049
        %v2053 = vmul.f32 1.0, %v2052
        %v2054 = vxor.u32 %v2035, 2147483648
        %v2055 = vxor.u32 %v2039, 2147483648
        %v2056 = vmul.f32 %v2054, 1.442695
        %v2057 = vpow.pop %v2056
        %v2058 = vmul.f32 %v2055, 1.442695
        %v2059 = vpow.pop %v2058
        %v2060 = vadd.f32 %v2057, 1.0
        %v2061 = vadd.f32 %v2059, 1.0
        %v2062 = vrcp.pop %v2060
        %v2063 = vmul.f32 1.0, %v2062
        %v2064 = vrcp.pop %v2061
        %v2065 = vmul.f32 1.0, %v2064
        %v2066 = vtanh.pop %v2036
        %v2067 = vtanh.pop %v2040
        %v2068 = vxor.u32 %v2037, 2147483648
        %v2069 = vxor.u32 %v2041, 2147483648
        %v2070 = vmul.f32 %v2068, 1.442695
        %v2071 = vpow.pop %v2070
        %v2072 = vmul.f32 %v2069, 1.442695
        %v2073 = vpow.pop %v2072
        %v2074 = vadd.f32 %v2071, 1.0
        %v2075 = vadd.f32 %v2073, 1.0
        %v2076 = vrcp.pop %v2074
        %v2077 = vmul.f32 1.0, %v2076
        %v2078 = vrcp.pop %v2075
        %v2079 = vmul.f32 1.0, %v2078
        %v2080 = vmul.f32 %v2063, %v1734
        %v2081 = vmul.f32 %v2065, %v1735
        %v2082 = vmul.f32 %v2051, %v2066
        %v2083 = vmul.f32 %v2053, %v2067
        %v2084 = vadd.f32 %v2080, %v2082
        %v2085 = vadd.f32 %v2081, %v2083
        %v2086 = vtanh.pop %v2084
        %v2087 = vtanh.pop %v2085
        %v2088 = vmul.f32 %v2077, %v2086
        %v2089 = vmul.f32 %v2079, %v2087
        %s2090 = sadd.s32 %s688, 3
        %p2091 = scmp.eq.s32.totalorder %s2090, 9
        // Predicated region
        $region65: #{tpu_custom_call.1} parent=35 // pred_check
          %p2092 = pneg %p2091
        $region66: #{tpu_custom_call.1} parent=35 // pred_check_branch
          %2094 = sbr.rel (%p2092) target = $region68
        $region67: #{tpu_custom_call.1} parent=35 // pred_region
          %2095 = vst [vmem:[#allocation11] sm:$0xff] %v2088
          %2096 = vst [vmem:[#allocation11 + $0x8] sm:$0xff] %v2089
        $region68: #{tpu_custom_call.1} parent=35 // pred_fallthru
          _
        %v2097 = vpack.c.bf16 %v2089, %v2088
        %v2099 = vunpack.c.l.b16 %v2097
        %v2100 = vunpack.c.h.b16 %v2097
        %v2101 = vpack.c.b16 %v2099, %v2099
        %v2102 = vpack.c.b16 %v2100, %v2100
        %2105 = vst [vmem:[#allocation3] sm:$0xf] %v2101
        %2106 = vst [vmem:[#allocation3 + $0x4] sm:$0xf] %v2102
        %2107 = vst [vmem:[#allocation4] sm:$0xff] %v2084
        %2108 = vst [vmem:[#allocation4 + $0x8] sm:$0xff] %v2085
        // Predicated region
        $region69: #{tpu_custom_call.1} parent=35 // pred_check
          %p2109 = pneg %p141
        $region70: #{tpu_custom_call.1} parent=35 // pred_check_branch
          %2111 = sbr.rel (%p2109) target = $region72
        $region71: #{tpu_custom_call.1} parent=35 // pred_region
          %s2112 = smul.u32 2, %s24
          %s2114 = ssub.s32 256, 256
          %2115 = vsyncadd [#allocation7], %s2114
          %s2116 = smul.addr %s2112, 128
          %s2117 = scalar_lea.hbm %s4, %s2116
          %s2118 = sshll.u32 [#allocation11], 4
          %s2119 = int_to_ptr.vmem [resolvable:$true] %s2118
          %2124 = dma.vmem_to_hbm [thread:$0]  %s2119, 256, %s2117, [#allocation7], 128, 128, 8
        $region72: #{tpu_custom_call.1} parent=35 // pred_fallthru
          _
        // Predicated region
        $region73: #{tpu_custom_call.1} parent=35 // pred_check
          %p2125 = pneg %p141
        $region74: #{tpu_custom_call.1} parent=35 // pred_check_branch
          %2127 = sbr.rel (%p2125) target = $region76
        $region75: #{tpu_custom_call.1} parent=35 // pred_region
          %2128 = dma.done [#allocation7], 256
        $region76: #{tpu_custom_call.1} parent=35 // pred_fallthru
          _
      $region36: #{tpu_custom_call.1} parent=5 // pred_fallthru
        _
      %p2129 = scmp.le.s32.totalorder 2, %s15
      // Predicated region
      $region77: #{tpu_custom_call.1} parent=5 // pred_check
        %p2130 = pneg %p2129
      $region78: #{tpu_custom_call.1} parent=5 // pred_check_branch
        %2132 = sbr.rel (%p2130) target = $region80
      $region79: #{tpu_custom_call.1} parent=5 // pred_region
        %s2133 = ssub.s32 %s15, 2
      $region80: #{tpu_custom_call.1} parent=5 // pred_fallthru
        _
    $region6: #{tpu_custom_call.1} parent=1 // loop_footer
      %s19 = sadd.s32 1, %s15
    $region7: #{tpu_custom_call.1} parent=1 // loop_footer_branch
      %14 = sbr.rel target = $region3
    $region8: #{tpu_custom_call.1} parent=1 // loop_exit
      _
    %2134 = vsyncpa [#allocation6], 1
    %s2135 = scalar_lea.sflag [#allocation6], 1
    %2136 = vsyncpa %s2135, 1
    %2137 = vsyncpa [#allocation9], 1
    %2138 = vsyncpa [#allocation7], 1
    %s2139 = scalar_lea.sflag [#allocation7], 1
    %2140 = vsyncpa %s2139, 1

</llo_original>
